<compile_context>
chip_gen: v5e
topology: v5e:2x2
jax: 0.10.0
libtpu: 0.0.40
codegen_flags: <defaults>
</compile_context>

<pallas_src>
import math

import jax
import jax.numpy as jnp
from jax import lax
from jax.experimental import pallas as pl
from jax.experimental.pallas import tpu as pltpu

# ----------------------------------------------------------------------------
# Small synthetic config (mirrors the fields the PyTorch module reads).
# ----------------------------------------------------------------------------
N_MELS = 8
REF_ENC_FILTERS = [8, 8, 16]       # K = 3 conv layers
REF_ENC_SIZE = 3                   # conv kernel size
REF_ENC_STRIDES = [2, 2]           # forward calls stride_lens twice -> two stride-2 convs
REF_ENC_GRU_SIZE = 8
E_HIDDEN = 16                      # model_config.encoder.n_hidden
TOKEN_NUM = 4
BOTTLENECK_U = 8
LEAKY_SLOPE = 0.3
IN_EPS = 1e-5                      # nn.InstanceNorm1d default eps


# ----------------------------------------------------------------------------
# One-time packing of kernel-ready constants (review: hoist everything that is
# shape-static out of the kernel).  Depends on batch N and max length T, so
# re-pack per (N, T) bucket in a real deployment.
# ----------------------------------------------------------------------------
def pack_params(params, n, t):
    ksz, pad = REF_ENC_SIZE, REF_ENC_SIZE // 2
    strides = [1] + list(REF_ENC_STRIDES)
    eye_n = jnp.eye(n, dtype=jnp.float32)
    packed = {}

    # AddCoords(rank=1, with_r=True): xx in [-1, 1] over time, r = |xx - 0.5|.
    # TODO(synk): T == 1 divides by zero exactly as torch AddCoords does.
    xx = jnp.arange(t, dtype=jnp.float32) / float(t - 1) * 2.0 - 1.0
    packed["coords"] = jnp.stack([xx, jnp.abs(xx - 0.5)], axis=0)          # [2, T]

    t_in = t
    for i in range(len(REF_ENC_FILTERS)):
        s = strides[i]
        w = params[f"conv{i}_w"]                                           # [C_out, C_in, K] torch layout
        # Stacked block-diagonal weight: one [K*N*C_out, N*C_in] MXU operand.
        packed[f"w{i}"] = jnp.concatenate(
            [jnp.kron(eye_n, w[:, :, k]) for k in range(ksz)], axis=0
        ).astype(jnp.bfloat16)
        # Per-tap [T_in, T_out] time gathers (implicit zero padding at the edges).
        t_out = (t_in + 2 * pad - ksz) // s + 1
        src = s * jnp.arange(t_out) + jnp.arange(ksz)[:, None] - pad        # [K, T_out]
        g = (jnp.arange(t_in)[None, :, None] == src[:, None, :]) & (src[:, None, :] >= 0)
        packed[f"g{i}"] = g.astype(jnp.bfloat16)                            # [K, T_in, T_out]
        # Per-(sample, channel) tiled conv bias / InstanceNorm affine (rows = n*C + c).
        packed[f"cb{i}"] = jnp.tile(params[f"conv{i}_b"], (n, 1))           # [N*C_out, 1]
        packed[f"gam{i}"] = jnp.tile(params[f"conv{i}_gamma"], (n, 1))
        packed[f"bet{i}"] = jnp.tile(params[f"conv{i}_beta"], (n, 1))
        t_in = t_out

    # GRU: gate-major blocks of (I_N (x) W) so gate slices stay contiguous and
    # each sample's recurrence is independent; r/z biases pre-summed.
    h = REF_ENC_GRU_SIZE
    wih, whh = params["gru_wih"], params["gru_whh"]
    bih, bhh = params["gru_bih"], params["gru_bhh"]
    packed["wih"] = jnp.concatenate(
        [jnp.kron(eye_n, wih[q * h:(q + 1) * h]) for q in range(3)], axis=0
    ).astype(jnp.bfloat16)                                                  # [3*N*H, N*C_gru]
    packed["whh"] = jnp.concatenate(
        [jnp.kron(eye_n, whh[q * h:(q + 1) * h]) for q in range(3)], axis=0)  # [3*N*H, N*H] f32
    packed["bih"] = jnp.concatenate(
        [jnp.tile(bih[0:h] + bhh[0:h], (n, 1)),
         jnp.tile(bih[h:2 * h] + bhh[h:2 * h], (n, 1)),
         jnp.tile(bih[2 * h:3 * h], (n, 1))], axis=0)                       # [3*N*H, 1]
    packed["bhhn"] = jnp.tile(bhh[2 * h:3 * h], (n, 1))                     # [N*H, 1] (torch n-gate)

    # Folded encoder_prj -> W_query -> keys/values -> encoder_bottleneck tail.
    e = E_HIDDEN
    keys_soft = jnp.tanh(params["stl_embed"])                               # [Tk, E]
    stl_k = keys_soft @ params["stl_wkey"].T                                # [Tk, E]
    stl_v = keys_soft @ params["stl_wvalue"].T                              # [Tk, E]
    a_common = (1.0 / math.sqrt(e)) * (stl_k @ params["stl_wquery"])        # [Tk, E//2]
    packed["A"] = a_common @ params["prj_w"]                                # [Tk, H]
    packed["Ab"] = a_common @ params["prj_b"]                               # [Tk, 1]
    packed["B"] = params["bottleneck_w"] @ stl_v.T                          # [U, Tk]
    packed["Bb"] = params["bottleneck_b"]                                   # [U, 1]
    return packed


# ----------------------------------------------------------------------------
# Host wrapper: boundary layout plumbing + ONE pallas_call.
# ----------------------------------------------------------------------------
def utterance_level_prosody_encoder(packed, mels, mel_lens):
    """mels: [N, n_mels, T] f32; mel_lens: [N] int.  Returns [N, 1, bottleneck_size_u]."""
    n, c_mel, t = mels.shape
    ksz, pad = REF_ENC_SIZE, REF_ENC_SIZE // 2
    strides = [1] + list(REF_ENC_STRIDES)
    c_outs = list(REF_ENC_FILTERS)
    t_seq = [t]
    for s in strides:
        t_seq.append((t_seq[-1] + 2 * pad - ksz) // s + 1)
    t3 = t_seq[-1]
    h_dim = REF_ENC_GRU_SIZE
    nh = n * h_dim
    u = BOTTLENECK_U

    # ---- per-call host-side prep (mask / coords / GRU validity are the only
    #      data-dependent constants; everything else came from pack_params).
    mask = jnp.arange(t)[None, :] < mel_lens[:, None]                       # True = valid frame
    x = jnp.where(mask[:, None, :], mels, 0.0)                              # masked_fill(mask, 0)
    x = jnp.concatenate(
        [x, jnp.broadcast_to(packed["coords"][None], (n, 2, t))], axis=1)   # AddCoords(with_r)
    x0 = x.reshape(n * (c_mel + 2), t).astype(jnp.bfloat16)                 # rows = n*C0 + c

    lens2 = mel_lens.astype(jnp.float32)
    for _ in range(2):                                                      # tools.stride_lens twice
        lens2 = jnp.ceil(lens2 * 0.5)
    valid = (jnp.arange(t3, dtype=jnp.float32)[None, :] < lens2[:, None]).astype(jnp.float32)
    valid = jnp.repeat(valid, h_dim, axis=0)                                # [N*H, T3]

    def kernel(x_ref,
               w0_ref, g0_ref, cb0_ref, ga0_ref, be0_ref,
               w1_ref, g1_ref, cb1_ref, ga1_ref, be1_ref,
               w2_ref, g2_ref, cb2_ref, ga2_ref, be2_ref,
               wih_ref, bih_ref, whh_ref, bhn_ref, val_ref,
               a_ref, ab_ref, bmat_ref, bb_ref, o_ref):

        def conv_in_block(xb, w_ref, g_ref, cb_ref, ga_ref, be_ref, rows_out):
            # Conv1d (stacked-tap block-diag weight + tiny time gathers)
            # -> leaky_relu(0.3) -> InstanceNorm1d(affine), all per (sample, channel).
            z = jnp.dot(w_ref[...], xb, preferred_element_type=jnp.float32)   # [K*rows_out, T_in]
            zb = z.astype(jnp.bfloat16)
            acc = jnp.dot(zb[0:rows_out], g_ref[0], preferred_element_type=jnp.float32)
            for k in range(1, ksz):
                acc = acc + jnp.dot(zb[k * rows_out:(k + 1) * rows_out], g_ref[k],
                                    preferred_element_type=jnp.float32)
            y = acc + cb_ref[...]
            y = jnp.where(y > 0, y, LEAKY_SLOPE * y)
            mu = jnp.mean(y, axis=-1, keepdims=True)              # per-(n,c) stats over time (XLU)
            cen = y - mu
            var = jnp.mean(cen * cen, axis=-1, keepdims=True)     # biased, as torch InstanceNorm1d
            y = cen * lax.rsqrt(var + IN_EPS) * ga_ref[...] + be_ref[...]
            return y.astype(jnp.bfloat16)

        y = conv_in_block(x_ref[...], w0_ref, g0_ref, cb0_ref, ga0_ref, be0_ref, n * c_outs[0])
        y = conv_in_block(y, w1_ref, g1_ref, cb1_ref, ga1_ref, be1_ref, n * c_outs[1])
        y = conv_in_block(y, w2_ref, g2_ref, cb2_ref, ga2_ref, be2_ref, n * c_outs[2])
        # y: [N*C_gru_in, T3].  The module's second masked_fill is skipped: the GRU
        # freeze below never uses steps t >= lens2, so `memory` is unchanged.

        # ---- GRU (pack_padded_sequence semantics -> final hidden state per sample).
        gi_all = jnp.dot(wih_ref[...], y, preferred_element_type=jnp.float32) + bih_ref[...]
        whh = whh_ref[...]
        bhn = bhn_ref[...]
        val = val_ref[...]
        h = jnp.zeros((nh, 1), jnp.float32)
        # TODO(synk): for long sequences (T2 > ~16) replace this static unroll with a
        # lax.fori_loop over a [T2, 3*N*H] staging buffer (perf-review item 7).
        for step in range(t3):
            gi = gi_all[:, step:step + 1]                                   # [3NH, 1] static slice
            gh = jnp.dot(whh, h, preferred_element_type=jnp.float32)        # [3NH, 1]
            r = jax.nn.sigmoid(gi[0:nh] + gh[0:nh])                         # b_ir+b_hr folded in bih
            zg = jax.nn.sigmoid(gi[nh:2 * nh] + gh[nh:2 * nh])              # b_iz+b_hz folded in bih
            cg = jnp.tanh(gi[2 * nh:3 * nh] + r * (gh[2 * nh:3 * nh] + bhn))
            h_new = cg + zg * (h - cg)                                      # (1-z)*c + z*h
            v = val[:, step:step + 1]
            h = h + v * (h_new - h)                                         # freeze past each length
        # h: [N*H, 1] == final GRU hidden state per sample ("memory").

        # ---- folded encoder_prj + STL attention + encoder_bottleneck.
        a = a_ref[...]                                                      # [Tk, H]
        cols = [jnp.dot(a, h[i * h_dim:(i + 1) * h_dim], preferred_element_type=jnp.float32)
                for i in range(n)]
        scores = (cols[0] if n == 1 else jnp.concatenate(cols, axis=1)) + ab_ref[...]  # [Tk, N]
        # Faithful to the reference graph: the query entering StyleEmbedAttention is
        # [1, 1, N, E//2], so F.softmax(scores, dim=3) normalizes over the batch axis N.
        m = jnp.max(scores, axis=1, keepdims=True)
        e = jnp.exp(scores - m)
        att = e / jnp.sum(e, axis=1, keepdims=True)                         # exact divide
        o_ref[...] = (jnp.dot(bmat_ref[...], att, preferred_element_type=jnp.float32)
                      + bb_ref[...])                                        # [U, N]
        # TODO(synk): nn.Dropout(ref_attention_dropout) treated as identity (eval mode).

    operands = (x0,
                packed["w0"], packed["g0"], packed["cb0"], packed["gam0"], packed["bet0"],
                packed["w1"], packed["g1"], packed["cb1"], packed["gam1"], packed["bet1"],
                packed["w2"], packed["g2"], packed["cb2"], packed["gam2"], packed["bet2"],
                packed["wih"], packed["bih"], packed["whh"], packed["bhhn"], valid,
                packed["A"], packed["Ab"], packed["B"], packed["Bb"])

    out_t = pl.pallas_call(
        kernel,
        out_shape=jax.ShapeDtypeStruct((u, n), jnp.float32),
        in_specs=[pl.BlockSpec(memory_space=pltpu.MemorySpace.VMEM)] * len(operands),
        out_specs=pl.BlockSpec(memory_space=pltpu.MemorySpace.VMEM),
    )(*operands)

    return jnp.transpose(out_t, (1, 0)).reshape(n, 1, u)    # == out.view((-1, 1, out.shape[3]))


# ----------------------------------------------------------------------------
# Deterministic synthetic parameters (shapes follow the module's __init__,
# kept in torch layout; pack_params does all kernel-ready transforms).
# ----------------------------------------------------------------------------
def init_params(key):
    key_it = iter(jax.random.split(key, 32))

    def nrm(shape, scale=0.3):
        return (scale * jax.random.normal(next(key_it), shape)).astype(jnp.float32)

    ksz = REF_ENC_SIZE
    filters = [N_MELS] + REF_ENC_FILTERS
    params = {}
    for i in range(len(REF_ENC_FILTERS)):
        c_in = filters[i] + (2 if i == 0 else 0)          # CoordConv1d(with_r=True) adds xx + r
        c_out = filters[i + 1]
        params[f"conv{i}_w"] = nrm((c_out, c_in, ksz))    # torch Conv1d weight layout [O, I, K]
        params[f"conv{i}_b"] = nrm((c_out, 1))
        params[f"conv{i}_gamma"] = 1.0 + nrm((c_out, 1))  # InstanceNorm1d affine weight
        params[f"conv{i}_beta"] = nrm((c_out, 1))         # InstanceNorm1d affine bias

    h = REF_ENC_GRU_SIZE
    e = E_HIDDEN
    params.update({
        "gru_wih": nrm((3 * h, REF_ENC_FILTERS[-1])),     # weight_ih_l0 [3H, C] (r|z|n)
        "gru_whh": nrm((3 * h, h)),                       # weight_hh_l0 [3H, H]
        "gru_bih": nrm((3 * h, 1)),
        "gru_bhh": nrm((3 * h, 1)),
        "prj_w": nrm((e // 2, h)),                        # encoder_prj: Linear(gru, E//2)
        "prj_b": nrm((e // 2, 1)),
        "stl_embed": (0.5 * jax.random.normal(next(key_it), (TOKEN_NUM, e))).astype(jnp.float32),
        "stl_wquery": nrm((e, e // 2)),                   # W_query: Linear(E//2, E, bias=False)
        "stl_wkey": nrm((e, e)),                          # W_key:   Linear(E, E, bias=False)
        "stl_wvalue": nrm((e, e)),                        # W_value: Linear(E, E, bias=False)
        "bottleneck_w": nrm((BOTTLENECK_U, e)),           # encoder_bottleneck: Linear(E, U)
        "bottleneck_b": nrm((BOTTLENECK_U, 1)),
    })
    return params


# ----------------------------------------------------------------------------
# Pure-jnp float32 transcription of the PyTorch graph, used only to validate
# the fused kernel (bf16 MXU feeds -> loose tolerance).
# ----------------------------------------------------------------------------
def reference_forward(params, mels, mel_lens):
    n, c_mel, t = mels.shape
    pad = REF_ENC_SIZE // 2
    strides = [1] + list(REF_ENC_STRIDES)
    mask = jnp.arange(t)[None, :] < mel_lens[:, None]
    x = jnp.where(mask[:, None, :], mels, 0.0)
    xx = jnp.arange(t, dtype=jnp.float32) / float(t - 1) * 2.0 - 1.0
    coords = jnp.stack([xx, jnp.abs(xx - 0.5)], axis=0)
    x = jnp.concatenate([x, jnp.broadcast_to(coords[None], (n, 2, t))], axis=1)
    for i in range(len(REF_ENC_FILTERS)):
        w = params[f"conv{i}_w"]
        x = lax.conv_general_dilated(x, w, window_strides=(strides[i],),
                                     padding=[(pad, pad)],
                                     dimension_numbers=("NCH", "OIH", "NCH"))
        x = x + params[f"conv{i}_b"][None, :, :]
        x = jnp.where(x > 0, x, LEAKY_SLOPE * x)
        mu = jnp.mean(x, axis=-1, keepdims=True)
        var = jnp.mean((x - mu) ** 2, axis=-1, keepdims=True)
        x = (x - mu) * lax.rsqrt(var + IN_EPS)
        x = x * params[f"conv{i}_gamma"][None, :, :] + params[f"conv{i}_beta"][None, :, :]
    lens2 = mel_lens.astype(jnp.float32)
    for _ in range(2):
        lens2 = jnp.ceil(lens2 * 0.5)
    h_dim = REF_ENC_GRU_SIZE
    wih, whh = params["gru_wih"], params["gru_whh"]
    bih, bhh = params["gru_bih"][:, 0], params["gru_bhh"][:, 0]
    h = jnp.zeros((n, h_dim), jnp.float32)
    for step in range(x.shape[-1]):
        xt = x[:, :, step]
        gi = xt @ wih.T + bih
        gh = h @ whh.T + bhh
        r = jax.nn.sigmoid(gi[:, :h_dim] + gh[:, :h_dim])
        z = jax.nn.sigmoid(gi[:, h_dim:2 * h_dim] + gh[:, h_dim:2 * h_dim])
        c = jnp.tanh(gi[:, 2 * h_dim:] + r * gh[:, 2 * h_dim:])
        h_new = (1.0 - z) * c + z * h
        v = (lens2 > step).astype(jnp.float32)[:, None]
        h = v * h_new + (1.0 - v) * h
    p = h @ params["prj_w"].T + params["prj_b"][:, 0]
    q = p @ params["stl_wquery"].T
    keys_soft = jnp.tanh(params["stl_embed"])
    keys = keys_soft @ params["stl_wkey"].T
    vals = keys_soft @ params["stl_wvalue"].T
    scores = (q @ keys.T) / math.sqrt(E_HIDDEN)
    att = jax.nn.softmax(scores, axis=0)      # batch-axis softmax (faithful to the torch graph)
    out = att @ vals
    out = out @ params["bottleneck_w"].T + params["bottleneck_b"][:, 0]
    return out.reshape(n, 1, -1)


if __name__ == "__main__":
    key = jax.random.PRNGKey(0)
    pkey, mkey = jax.random.split(key)
    params = init_params(pkey)

    N, T = 2, 16
    mels = jax.random.normal(mkey, (N, N_MELS, T), dtype=jnp.float32)   # [N, n_mels, timesteps]
    mel_lens = jnp.array([16, 11], dtype=jnp.int32)                     # max(mel_lens) == T

    packed = pack_params(params, N, T)                                  # one-time, outside jit
    fwd = jax.jit(utterance_level_prosody_encoder)
    out = jax.block_until_ready(fwd(packed, mels, mel_lens))

    assert out.shape == (N, 1, BOTTLENECK_U), out.shape
    assert bool(jnp.all(jnp.isfinite(out)))

    ref = jax.block_until_ready(jax.jit(reference_forward)(params, mels, mel_lens))
    assert bool(jnp.allclose(out, ref, atol=5e-2, rtol=5e-2)), float(jnp.max(jnp.abs(out - ref)))
    print("KERNEL_OK")
</pallas_src>

<mosaic_0001>
module attributes {stable_mosaic.version = 11 : i64} {
  func.func @kernel(%arg0: memref<20x16xbf16, #tpu.memory_space<vmem>>, %arg1: memref<48x20xbf16, #tpu.memory_space<vmem>>, %arg2: memref<3x16x16xbf16, #tpu.memory_space<vmem>>, %arg3: memref<16x1xf32, #tpu.memory_space<vmem>>, %arg4: memref<16x1xf32, #tpu.memory_space<vmem>>, %arg5: memref<16x1xf32, #tpu.memory_space<vmem>>, %arg6: memref<48x16xbf16, #tpu.memory_space<vmem>>, %arg7: memref<3x16x8xbf16, #tpu.memory_space<vmem>>, %arg8: memref<16x1xf32, #tpu.memory_space<vmem>>, %arg9: memref<16x1xf32, #tpu.memory_space<vmem>>, %arg10: memref<16x1xf32, #tpu.memory_space<vmem>>, %arg11: memref<96x16xbf16, #tpu.memory_space<vmem>>, %arg12: memref<3x8x4xbf16, #tpu.memory_space<vmem>>, %arg13: memref<32x1xf32, #tpu.memory_space<vmem>>, %arg14: memref<32x1xf32, #tpu.memory_space<vmem>>, %arg15: memref<32x1xf32, #tpu.memory_space<vmem>>, %arg16: memref<48x32xbf16, #tpu.memory_space<vmem>>, %arg17: memref<48x1xf32, #tpu.memory_space<vmem>>, %arg18: memref<48x16xf32, #tpu.memory_space<vmem>>, %arg19: memref<16x1xf32, #tpu.memory_space<vmem>>, %arg20: memref<16x4xf32, #tpu.memory_space<vmem>>, %arg21: memref<4x8xf32, #tpu.memory_space<vmem>>, %arg22: memref<4x1xf32, #tpu.memory_space<vmem>>, %arg23: memref<8x4xf32, #tpu.memory_space<vmem>>, %arg24: memref<8x1xf32, #tpu.memory_space<vmem>>, %arg25: memref<8x2xf32, #tpu.memory_space<vmem>>) attributes {dimension_semantics = [], scalar_prefetch = 0 : i64, scratch_operands = 0 : i64, tpu.core_type = #tpu.core_type<tc>} {
    %c0 = arith.constant 0 : index
    %c0_0 = arith.constant 0 : index
    %0 = vector.load %arg0[%c0, %c0_0] : memref<20x16xbf16, #tpu.memory_space<vmem>>, vector<20x16xbf16>
    %c0_1 = arith.constant 0 : index
    %c0_2 = arith.constant 0 : index
    %1 = vector.load %arg1[%c0_1, %c0_2] : memref<48x20xbf16, #tpu.memory_space<vmem>>, vector<48x20xbf16>
    %cst = arith.constant dense<0.000000e+00> : vector<48x16xf32>
    %2 = tpu.matmul %1, %0, %cst {dimension_numbers = #tpu.dot_dimension_numbers<[1], [0], [0], [1], [0, 0, 1, 1], [], []>} : vector<48x20xbf16>, vector<20x16xbf16>, vector<48x16xf32> -> vector<48x16xf32>
    %3 = arith.truncf %2 : vector<48x16xf32> to vector<48x16xbf16>
    %4 = vector.extract_strided_slice %3 {offsets = [0, 0], sizes = [16, 16], strides = [1, 1]} : vector<48x16xbf16> to vector<16x16xbf16>
    %c0_3 = arith.constant 0 : index
    %c0_4 = arith.constant 0 : index
    %c0_5 = arith.constant 0 : index
    %5 = vector.load %arg2[%c0_3, %c0_4, %c0_5] : memref<3x16x16xbf16, #tpu.memory_space<vmem>>, vector<1x16x16xbf16>
    %6 = vector.shape_cast %5 : vector<1x16x16xbf16> to vector<16x16xbf16>
    %cst_6 = arith.constant dense<0.000000e+00> : vector<16x16xf32>
    %7 = tpu.matmul %4, %6, %cst_6 {dimension_numbers = #tpu.dot_dimension_numbers<[1], [0], [0], [1], [0, 0, 1, 1], [], []>} : vector<16x16xbf16>, vector<16x16xbf16>, vector<16x16xf32> -> vector<16x16xf32>
    %8 = vector.extract_strided_slice %3 {offsets = [16, 0], sizes = [16, 16], strides = [1, 1]} : vector<48x16xbf16> to vector<16x16xbf16>
    %c1 = arith.constant 1 : index
    %c0_7 = arith.constant 0 : index
    %c0_8 = arith.constant 0 : index
    %9 = vector.load %arg2[%c1, %c0_7, %c0_8] : memref<3x16x16xbf16, #tpu.memory_space<vmem>>, vector<1x16x16xbf16>
    %10 = vector.shape_cast %9 : vector<1x16x16xbf16> to vector<16x16xbf16>
    %cst_9 = arith.constant dense<0.000000e+00> : vector<16x16xf32>
    %11 = tpu.matmul %8, %10, %cst_9 {dimension_numbers = #tpu.dot_dimension_numbers<[1], [0], [0], [1], [0, 0, 1, 1], [], []>} : vector<16x16xbf16>, vector<16x16xbf16>, vector<16x16xf32> -> vector<16x16xf32>
    %12 = arith.addf %7, %11 : vector<16x16xf32>
    %13 = vector.extract_strided_slice %3 {offsets = [32, 0], sizes = [16, 16], strides = [1, 1]} : vector<48x16xbf16> to vector<16x16xbf16>
    %c2 = arith.constant 2 : index
    %c0_10 = arith.constant 0 : index
    %c0_11 = arith.constant 0 : index
    %14 = vector.load %arg2[%c2, %c0_10, %c0_11] : memref<3x16x16xbf16, #tpu.memory_space<vmem>>, vector<1x16x16xbf16>
    %15 = vector.shape_cast %14 : vector<1x16x16xbf16> to vector<16x16xbf16>
    %cst_12 = arith.constant dense<0.000000e+00> : vector<16x16xf32>
    %16 = tpu.matmul %13, %15, %cst_12 {dimension_numbers = #tpu.dot_dimension_numbers<[1], [0], [0], [1], [0, 0, 1, 1], [], []>} : vector<16x16xbf16>, vector<16x16xbf16>, vector<16x16xf32> -> vector<16x16xf32>
    %17 = arith.addf %12, %16 : vector<16x16xf32>
    %c0_13 = arith.constant 0 : index
    %c0_14 = arith.constant 0 : index
    %18 = vector.load %arg3[%c0_13, %c0_14] : memref<16x1xf32, #tpu.memory_space<vmem>>, vector<16x1xf32>
    %19 = vector.broadcast %18 : vector<16x1xf32> to vector<16x16xf32>
    %20 = arith.addf %17, %19 : vector<16x16xf32>
    %cst_15 = arith.constant 0.000000e+00 : f32
    %21 = vector.broadcast %cst_15 : f32 to vector<16x16xf32>
    %22 = arith.cmpf ogt, %20, %21 : vector<16x16xf32>
    %cst_16 = arith.constant 3.000000e-01 : f32
    %23 = vector.broadcast %cst_16 : f32 to vector<16x16xf32>
    %24 = arith.mulf %23, %20 : vector<16x16xf32>
    %25 = arith.select %22, %20, %24 : vector<16x16xi1>, vector<16x16xf32>
    %cst_17 = arith.constant dense<0.000000e+00> : vector<16xf32>
    %26 = vector.multi_reduction <add>, %25, %cst_17 [1] : vector<16x16xf32> to vector<16xf32>
    %27 = vector.shape_cast %26 : vector<16xf32> to vector<16x1xf32>
    %cst_18 = arith.constant 1.600000e+01 : f32
    %28 = vector.broadcast %cst_18 : f32 to vector<16x1xf32>
    %29 = arith.divf %27, %28 : vector<16x1xf32>
    %30 = vector.broadcast %29 : vector<16x1xf32> to vector<16x16xf32>
    %31 = arith.subf %25, %30 : vector<16x16xf32>
    %32 = arith.mulf %31, %31 : vector<16x16xf32>
    %cst_19 = arith.constant dense<0.000000e+00> : vector<16xf32>
    %33 = vector.multi_reduction <add>, %32, %cst_19 [1] : vector<16x16xf32> to vector<16xf32>
    %34 = vector.shape_cast %33 : vector<16xf32> to vector<16x1xf32>
    %cst_20 = arith.constant 1.600000e+01 : f32
    %35 = vector.broadcast %cst_20 : f32 to vector<16x1xf32>
    %36 = arith.divf %34, %35 : vector<16x1xf32>
    %cst_21 = arith.constant 9.99999974E-6 : f32
    %37 = vector.broadcast %cst_21 : f32 to vector<16x1xf32>
    %38 = arith.addf %36, %37 : vector<16x1xf32>
    %39 = math.rsqrt %38 : vector<16x1xf32>
    %40 = vector.broadcast %39 : vector<16x1xf32> to vector<16x16xf32>
    %41 = arith.mulf %31, %40 : vector<16x16xf32>
    %c0_22 = arith.constant 0 : index
    %c0_23 = arith.constant 0 : index
    %42 = vector.load %arg4[%c0_22, %c0_23] : memref<16x1xf32, #tpu.memory_space<vmem>>, vector<16x1xf32>
    %43 = vector.broadcast %42 : vector<16x1xf32> to vector<16x16xf32>
    %44 = arith.mulf %41, %43 : vector<16x16xf32>
    %c0_24 = arith.constant 0 : index
    %c0_25 = arith.constant 0 : index
    %45 = vector.load %arg5[%c0_24, %c0_25] : memref<16x1xf32, #tpu.memory_space<vmem>>, vector<16x1xf32>
    %46 = vector.broadcast %45 : vector<16x1xf32> to vector<16x16xf32>
    %47 = arith.addf %44, %46 : vector<16x16xf32>
    %48 = arith.truncf %47 : vector<16x16xf32> to vector<16x16xbf16>
    %c0_26 = arith.constant 0 : index
    %c0_27 = arith.constant 0 : index
    %49 = vector.load %arg6[%c0_26, %c0_27] : memref<48x16xbf16, #tpu.memory_space<vmem>>, vector<48x16xbf16>
    %cst_28 = arith.constant dense<0.000000e+00> : vector<48x16xf32>
    %50 = tpu.matmul %49, %48, %cst_28 {dimension_numbers = #tpu.dot_dimension_numbers<[1], [0], [0], [1], [0, 0, 1, 1], [], []>} : vector<48x16xbf16>, vector<16x16xbf16>, vector<48x16xf32> -> vector<48x16xf32>
    %51 = arith.truncf %50 : vector<48x16xf32> to vector<48x16xbf16>
    %52 = vector.extract_strided_slice %51 {offsets = [0, 0], sizes = [16, 16], strides = [1, 1]} : vector<48x16xbf16> to vector<16x16xbf16>
    %c0_29 = arith.constant 0 : index
    %c0_30 = arith.constant 0 : index
    %c0_31 = arith.constant 0 : index
    %53 = vector.load %arg7[%c0_29, %c0_30, %c0_31] : memref<3x16x8xbf16, #tpu.memory_space<vmem>>, vector<1x16x8xbf16>
    %54 = vector.shape_cast %53 : vector<1x16x8xbf16> to vector<16x8xbf16>
    %cst_32 = arith.constant dense<0.000000e+00> : vector<16x8xf32>
    %55 = tpu.matmul %52, %54, %cst_32 {dimension_numbers = #tpu.dot_dimension_numbers<[1], [0], [0], [1], [0, 0, 1, 1], [], []>} : vector<16x16xbf16>, vector<16x8xbf16>, vector<16x8xf32> -> vector<16x8xf32>
    %56 = vector.extract_strided_slice %51 {offsets = [16, 0], sizes = [16, 16], strides = [1, 1]} : vector<48x16xbf16> to vector<16x16xbf16>
    %c1_33 = arith.constant 1 : index
    %c0_34 = arith.constant 0 : index
    %c0_35 = arith.constant 0 : index
    %57 = vector.load %arg7[%c1_33, %c0_34, %c0_35] : memref<3x16x8xbf16, #tpu.memory_space<vmem>>, vector<1x16x8xbf16>
    %58 = vector.shape_cast %57 : vector<1x16x8xbf16> to vector<16x8xbf16>
    %cst_36 = arith.constant dense<0.000000e+00> : vector<16x8xf32>
    %59 = tpu.matmul %56, %58, %cst_36 {dimension_numbers = #tpu.dot_dimension_numbers<[1], [0], [0], [1], [0, 0, 1, 1], [], []>} : vector<16x16xbf16>, vector<16x8xbf16>, vector<16x8xf32> -> vector<16x8xf32>
    %60 = arith.addf %55, %59 : vector<16x8xf32>
    %61 = vector.extract_strided_slice %51 {offsets = [32, 0], sizes = [16, 16], strides = [1, 1]} : vector<48x16xbf16> to vector<16x16xbf16>
    %c2_37 = arith.constant 2 : index
    %c0_38 = arith.constant 0 : index
    %c0_39 = arith.constant 0 : index
    %62 = vector.load %arg7[%c2_37, %c0_38, %c0_39] : memref<3x16x8xbf16, #tpu.memory_space<vmem>>, vector<1x16x8xbf16>
    %63 = vector.shape_cast %62 : vector<1x16x8xbf16> to vector<16x8xbf16>
    %cst_40 = arith.constant dense<0.000000e+00> : vector<16x8xf32>
    %64 = tpu.matmul %61, %63, %cst_40 {dimension_numbers = #tpu.dot_dimension_numbers<[1], [0], [0], [1], [0, 0, 1, 1], [], []>} : vector<16x16xbf16>, vector<16x8xbf16>, vector<16x8xf32> -> vector<16x8xf32>
    %65 = arith.addf %60, %64 : vector<16x8xf32>
    %c0_41 = arith.constant 0 : index
    %c0_42 = arith.constant 0 : index
    %66 = vector.load %arg8[%c0_41, %c0_42] : memref<16x1xf32, #tpu.memory_space<vmem>>, vector<16x1xf32>
    %67 = vector.broadcast %66 : vector<16x1xf32> to vector<16x8xf32>
    %68 = arith.addf %65, %67 : vector<16x8xf32>
    %cst_43 = arith.constant 0.000000e+00 : f32
    %69 = vector.broadcast %cst_43 : f32 to vector<16x8xf32>
    %70 = arith.cmpf ogt, %68, %69 : vector<16x8xf32>
    %cst_44 = arith.constant 3.000000e-01 : f32
    %71 = vector.broadcast %cst_44 : f32 to vector<16x8xf32>
    %72 = arith.mulf %71, %68 : vector<16x8xf32>
    %73 = arith.select %70, %68, %72 : vector<16x8xi1>, vector<16x8xf32>
    %cst_45 = arith.constant dense<0.000000e+00> : vector<16xf32>
    %74 = vector.multi_reduction <add>, %73, %cst_45 [1] : vector<16x8xf32> to vector<16xf32>
    %75 = vector.shape_cast %74 : vector<16xf32> to vector<16x1xf32>
    %cst_46 = arith.constant 8.000000e+00 : f32
    %76 = vector.broadcast %cst_46 : f32 to vector<16x1xf32>
    %77 = arith.divf %75, %76 : vector<16x1xf32>
    %78 = vector.broadcast %77 : vector<16x1xf32> to vector<16x8xf32>
    %79 = arith.subf %73, %78 : vector<16x8xf32>
    %80 = arith.mulf %79, %79 : vector<16x8xf32>
    %cst_47 = arith.constant dense<0.000000e+00> : vector<16xf32>
    %81 = vector.multi_reduction <add>, %80, %cst_47 [1] : vector<16x8xf32> to vector<16xf32>
    %82 = vector.shape_cast %81 : vector<16xf32> to vector<16x1xf32>
    %cst_48 = arith.constant 8.000000e+00 : f32
    %83 = vector.broadcast %cst_48 : f32 to vector<16x1xf32>
    %84 = arith.divf %82, %83 : vector<16x1xf32>
    %cst_49 = arith.constant 9.99999974E-6 : f32
    %85 = vector.broadcast %cst_49 : f32 to vector<16x1xf32>
    %86 = arith.addf %84, %85 : vector<16x1xf32>
    %87 = math.rsqrt %86 : vector<16x1xf32>
    %88 = vector.broadcast %87 : vector<16x1xf32> to vector<16x8xf32>
    %89 = arith.mulf %79, %88 : vector<16x8xf32>
    %c0_50 = arith.constant 0 : index
    %c0_51 = arith.constant 0 : index
    %90 = vector.load %arg9[%c0_50, %c0_51] : memref<16x1xf32, #tpu.memory_space<vmem>>, vector<16x1xf32>
    %91 = vector.broadcast %90 : vector<16x1xf32> to vector<16x8xf32>
    %92 = arith.mulf %89, %91 : vector<16x8xf32>
    %c0_52 = arith.constant 0 : index
    %c0_53 = arith.constant 0 : index
    %93 = vector.load %arg10[%c0_52, %c0_53] : memref<16x1xf32, #tpu.memory_space<vmem>>, vector<16x1xf32>
    %94 = vector.broadcast %93 : vector<16x1xf32> to vector<16x8xf32>
    %95 = arith.addf %92, %94 : vector<16x8xf32>
    %96 = arith.truncf %95 : vector<16x8xf32> to vector<16x8xbf16>
    %c0_54 = arith.constant 0 : index
    %c0_55 = arith.constant 0 : index
    %97 = vector.load %arg11[%c0_54, %c0_55] : memref<96x16xbf16, #tpu.memory_space<vmem>>, vector<96x16xbf16>
    %cst_56 = arith.constant dense<0.000000e+00> : vector<96x8xf32>
    %98 = tpu.matmul %97, %96, %cst_56 {dimension_numbers = #tpu.dot_dimension_numbers<[1], [0], [0], [1], [0, 0, 1, 1], [], []>} : vector<96x16xbf16>, vector<16x8xbf16>, vector<96x8xf32> -> vector<96x8xf32>
    %99 = arith.truncf %98 : vector<96x8xf32> to vector<96x8xbf16>
    %100 = vector.extract_strided_slice %99 {offsets = [0, 0], sizes = [32, 8], strides = [1, 1]} : vector<96x8xbf16> to vector<32x8xbf16>
    %c0_57 = arith.constant 0 : index
    %c0_58 = arith.constant 0 : index
    %c0_59 = arith.constant 0 : index
    %101 = vector.load %arg12[%c0_57, %c0_58, %c0_59] : memref<3x8x4xbf16, #tpu.memory_space<vmem>>, vector<1x8x4xbf16>
    %102 = vector.shape_cast %101 : vector<1x8x4xbf16> to vector<8x4xbf16>
    %cst_60 = arith.constant dense<0.000000e+00> : vector<32x4xf32>
    %103 = tpu.matmul %100, %102, %cst_60 {dimension_numbers = #tpu.dot_dimension_numbers<[1], [0], [0], [1], [0, 0, 1, 1], [], []>} : vector<32x8xbf16>, vector<8x4xbf16>, vector<32x4xf32> -> vector<32x4xf32>
    %104 = vector.extract_strided_slice %99 {offsets = [32, 0], sizes = [32, 8], strides = [1, 1]} : vector<96x8xbf16> to vector<32x8xbf16>
    %c1_61 = arith.constant 1 : index
    %c0_62 = arith.constant 0 : index
    %c0_63 = arith.constant 0 : index
    %105 = vector.load %arg12[%c1_61, %c0_62, %c0_63] : memref<3x8x4xbf16, #tpu.memory_space<vmem>>, vector<1x8x4xbf16>
    %106 = vector.shape_cast %105 : vector<1x8x4xbf16> to vector<8x4xbf16>
    %cst_64 = arith.constant dense<0.000000e+00> : vector<32x4xf32>
    %107 = tpu.matmul %104, %106, %cst_64 {dimension_numbers = #tpu.dot_dimension_numbers<[1], [0], [0], [1], [0, 0, 1, 1], [], []>} : vector<32x8xbf16>, vector<8x4xbf16>, vector<32x4xf32> -> vector<32x4xf32>
    %108 = arith.addf %103, %107 : vector<32x4xf32>
    %109 = vector.extract_strided_slice %99 {offsets = [64, 0], sizes = [32, 8], strides = [1, 1]} : vector<96x8xbf16> to vector<32x8xbf16>
    %c2_65 = arith.constant 2 : index
    %c0_66 = arith.constant 0 : index
    %c0_67 = arith.constant 0 : index
    %110 = vector.load %arg12[%c2_65, %c0_66, %c0_67] : memref<3x8x4xbf16, #tpu.memory_space<vmem>>, vector<1x8x4xbf16>
    %111 = vector.shape_cast %110 : vector<1x8x4xbf16> to vector<8x4xbf16>
    %cst_68 = arith.constant dense<0.000000e+00> : vector<32x4xf32>
    %112 = tpu.matmul %109, %111, %cst_68 {dimension_numbers = #tpu.dot_dimension_numbers<[1], [0], [0], [1], [0, 0, 1, 1], [], []>} : vector<32x8xbf16>, vector<8x4xbf16>, vector<32x4xf32> -> vector<32x4xf32>
    %113 = arith.addf %108, %112 : vector<32x4xf32>
    %c0_69 = arith.constant 0 : index
    %c0_70 = arith.constant 0 : index
    %114 = vector.load %arg13[%c0_69, %c0_70] : memref<32x1xf32, #tpu.memory_space<vmem>>, vector<32x1xf32>
    %115 = vector.broadcast %114 : vector<32x1xf32> to vector<32x4xf32>
    %116 = arith.addf %113, %115 : vector<32x4xf32>
    %cst_71 = arith.constant 0.000000e+00 : f32
    %117 = vector.broadcast %cst_71 : f32 to vector<32x4xf32>
    %118 = arith.cmpf ogt, %116, %117 : vector<32x4xf32>
    %cst_72 = arith.constant 3.000000e-01 : f32
    %119 = vector.broadcast %cst_72 : f32 to vector<32x4xf32>
    %120 = arith.mulf %119, %116 : vector<32x4xf32>
    %121 = arith.select %118, %116, %120 : vector<32x4xi1>, vector<32x4xf32>
    %cst_73 = arith.constant dense<0.000000e+00> : vector<32xf32>
    %122 = vector.multi_reduction <add>, %121, %cst_73 [1] : vector<32x4xf32> to vector<32xf32>
    %123 = vector.shape_cast %122 : vector<32xf32> to vector<32x1xf32>
    %cst_74 = arith.constant 4.000000e+00 : f32
    %124 = vector.broadcast %cst_74 : f32 to vector<32x1xf32>
    %125 = arith.divf %123, %124 : vector<32x1xf32>
    %126 = vector.broadcast %125 : vector<32x1xf32> to vector<32x4xf32>
    %127 = arith.subf %121, %126 : vector<32x4xf32>
    %128 = arith.mulf %127, %127 : vector<32x4xf32>
    %cst_75 = arith.constant dense<0.000000e+00> : vector<32xf32>
    %129 = vector.multi_reduction <add>, %128, %cst_75 [1] : vector<32x4xf32> to vector<32xf32>
    %130 = vector.shape_cast %129 : vector<32xf32> to vector<32x1xf32>
    %cst_76 = arith.constant 4.000000e+00 : f32
    %131 = vector.broadcast %cst_76 : f32 to vector<32x1xf32>
    %132 = arith.divf %130, %131 : vector<32x1xf32>
    %cst_77 = arith.constant 9.99999974E-6 : f32
    %133 = vector.broadcast %cst_77 : f32 to vector<32x1xf32>
    %134 = arith.addf %132, %133 : vector<32x1xf32>
    %135 = math.rsqrt %134 : vector<32x1xf32>
    %136 = vector.broadcast %135 : vector<32x1xf32> to vector<32x4xf32>
    %137 = arith.mulf %127, %136 : vector<32x4xf32>
    %c0_78 = arith.constant 0 : index
    %c0_79 = arith.constant 0 : index
    %138 = vector.load %arg14[%c0_78, %c0_79] : memref<32x1xf32, #tpu.memory_space<vmem>>, vector<32x1xf32>
    %139 = vector.broadcast %138 : vector<32x1xf32> to vector<32x4xf32>
    %140 = arith.mulf %137, %139 : vector<32x4xf32>
    %c0_80 = arith.constant 0 : index
    %c0_81 = arith.constant 0 : index
    %141 = vector.load %arg15[%c0_80, %c0_81] : memref<32x1xf32, #tpu.memory_space<vmem>>, vector<32x1xf32>
    %142 = vector.broadcast %141 : vector<32x1xf32> to vector<32x4xf32>
    %143 = arith.addf %140, %142 : vector<32x4xf32>
    %144 = arith.truncf %143 : vector<32x4xf32> to vector<32x4xbf16>
    %c0_82 = arith.constant 0 : index
    %c0_83 = arith.constant 0 : index
    %145 = vector.load %arg16[%c0_82, %c0_83] : memref<48x32xbf16, #tpu.memory_space<vmem>>, vector<48x32xbf16>
    %cst_84 = arith.constant dense<0.000000e+00> : vector<48x4xf32>
    %146 = tpu.matmul %145, %144, %cst_84 {dimension_numbers = #tpu.dot_dimension_numbers<[1], [0], [0], [1], [0, 0, 1, 1], [], []>} : vector<48x32xbf16>, vector<32x4xbf16>, vector<48x4xf32> -> vector<48x4xf32>
    %c0_85 = arith.constant 0 : index
    %c0_86 = arith.constant 0 : index
    %147 = vector.load %arg17[%c0_85, %c0_86] : memref<48x1xf32, #tpu.memory_space<vmem>>, vector<48x1xf32>
    %148 = vector.broadcast %147 : vector<48x1xf32> to vector<48x4xf32>
    %149 = arith.addf %146, %148 : vector<48x4xf32>
    %c0_87 = arith.constant 0 : index
    %c0_88 = arith.constant 0 : index
    %150 = vector.load %arg18[%c0_87, %c0_88] : memref<48x16xf32, #tpu.memory_space<vmem>>, vector<48x16xf32>
    %c0_89 = arith.constant 0 : index
    %c0_90 = arith.constant 0 : index
    %151 = vector.load %arg19[%c0_89, %c0_90] : memref<16x1xf32, #tpu.memory_space<vmem>>, vector<16x1xf32>
    %c0_91 = arith.constant 0 : index
    %c0_92 = arith.constant 0 : index
    %152 = vector.load %arg20[%c0_91, %c0_92] : memref<16x4xf32, #tpu.memory_space<vmem>>, vector<16x4xf32>
    %cst_93 = arith.constant 0.000000e+00 : f32
    %153 = vector.broadcast %cst_93 : f32 to vector<16x1xf32>
    %154 = vector.extract_strided_slice %149 {offsets = [0, 0], sizes = [48, 1], strides = [1, 1]} : vector<48x4xf32> to vector<48x1xf32>
    %cst_94 = arith.constant dense<0.000000e+00> : vector<48x1xf32>
    %155 = tpu.matmul %150, %153, %cst_94 {dimension_numbers = #tpu.dot_dimension_numbers<[1], [0], [0], [1], [0, 0, 1, 1], [], []>} : vector<48x16xf32>, vector<16x1xf32>, vector<48x1xf32> -> vector<48x1xf32>
    %156 = vector.extract_strided_slice %154 {offsets = [0, 0], sizes = [16, 1], strides = [1, 1]} : vector<48x1xf32> to vector<16x1xf32>
    %157 = vector.extract_strided_slice %155 {offsets = [0, 0], sizes = [16, 1], strides = [1, 1]} : vector<48x1xf32> to vector<16x1xf32>
    %158 = arith.addf %156, %157 : vector<16x1xf32>
    %159 = arith.negf %158 : vector<16x1xf32>
    %160 = math.exp %159 : vector<16x1xf32>
    %cst_95 = arith.constant 1.000000e+00 : f32
    %161 = vector.broadcast %cst_95 : f32 to vector<16x1xf32>
    %162 = arith.addf %161, %160 : vector<16x1xf32>
    %163 = arith.divf %161, %162 : vector<16x1xf32>
    %164 = vector.extract_strided_slice %154 {offsets = [16, 0], sizes = [16, 1], strides = [1, 1]} : vector<48x1xf32> to vector<16x1xf32>
    %165 = vector.extract_strided_slice %155 {offsets = [16, 0], sizes = [16, 1], strides = [1, 1]} : vector<48x1xf32> to vector<16x1xf32>
    %166 = arith.addf %164, %165 : vector<16x1xf32>
    %167 = arith.negf %166 : vector<16x1xf32>
    %168 = math.exp %167 : vector<16x1xf32>
    %cst_96 = arith.constant 1.000000e+00 : f32
    %169 = vector.broadcast %cst_96 : f32 to vector<16x1xf32>
    %170 = arith.addf %169, %168 : vector<16x1xf32>
    %171 = arith.divf %169, %170 : vector<16x1xf32>
    %172 = vector.extract_strided_slice %154 {offsets = [32, 0], sizes = [16, 1], strides = [1, 1]} : vector<48x1xf32> to vector<16x1xf32>
    %173 = vector.extract_strided_slice %155 {offsets = [32, 0], sizes = [16, 1], strides = [1, 1]} : vector<48x1xf32> to vector<16x1xf32>
    %174 = arith.addf %173, %151 : vector<16x1xf32>
    %175 = arith.mulf %163, %174 : vector<16x1xf32>
    %176 = arith.addf %172, %175 : vector<16x1xf32>
    %177 = math.tanh %176 : vector<16x1xf32>
    %178 = arith.subf %153, %177 : vector<16x1xf32>
    %179 = arith.mulf %171, %178 : vector<16x1xf32>
    %180 = arith.addf %177, %179 : vector<16x1xf32>
    %181 = vector.extract_strided_slice %152 {offsets = [0, 0], sizes = [16, 1], strides = [1, 1]} : vector<16x4xf32> to vector<16x1xf32>
    %182 = arith.subf %180, %153 : vector<16x1xf32>
    %183 = arith.mulf %181, %182 : vector<16x1xf32>
    %184 = arith.addf %153, %183 : vector<16x1xf32>
    %185 = vector.extract_strided_slice %149 {offsets = [0, 1], sizes = [48, 1], strides = [1, 1]} : vector<48x4xf32> to vector<48x1xf32>
    %cst_97 = arith.constant dense<0.000000e+00> : vector<48x1xf32>
    %186 = tpu.matmul %150, %184, %cst_97 {dimension_numbers = #tpu.dot_dimension_numbers<[1], [0], [0], [1], [0, 0, 1, 1], [], []>} : vector<48x16xf32>, vector<16x1xf32>, vector<48x1xf32> -> vector<48x1xf32>
    %187 = vector.extract_strided_slice %185 {offsets = [0, 0], sizes = [16, 1], strides = [1, 1]} : vector<48x1xf32> to vector<16x1xf32>
    %188 = vector.extract_strided_slice %186 {offsets = [0, 0], sizes = [16, 1], strides = [1, 1]} : vector<48x1xf32> to vector<16x1xf32>
    %189 = arith.addf %187, %188 : vector<16x1xf32>
    %190 = arith.negf %189 : vector<16x1xf32>
    %191 = math.exp %190 : vector<16x1xf32>
    %cst_98 = arith.constant 1.000000e+00 : f32
    %192 = vector.broadcast %cst_98 : f32 to vector<16x1xf32>
    %193 = arith.addf %192, %191 : vector<16x1xf32>
    %194 = arith.divf %192, %193 : vector<16x1xf32>
    %195 = vector.extract_strided_slice %185 {offsets = [16, 0], sizes = [16, 1], strides = [1, 1]} : vector<48x1xf32> to vector<16x1xf32>
    %196 = vector.extract_strided_slice %186 {offsets = [16, 0], sizes = [16, 1], strides = [1, 1]} : vector<48x1xf32> to vector<16x1xf32>
    %197 = arith.addf %195, %196 : vector<16x1xf32>
    %198 = arith.negf %197 : vector<16x1xf32>
    %199 = math.exp %198 : vector<16x1xf32>
    %cst_99 = arith.constant 1.000000e+00 : f32
    %200 = vector.broadcast %cst_99 : f32 to vector<16x1xf32>
    %201 = arith.addf %200, %199 : vector<16x1xf32>
    %202 = arith.divf %200, %201 : vector<16x1xf32>
    %203 = vector.extract_strided_slice %185 {offsets = [32, 0], sizes = [16, 1], strides = [1, 1]} : vector<48x1xf32> to vector<16x1xf32>
    %204 = vector.extract_strided_slice %186 {offsets = [32, 0], sizes = [16, 1], strides = [1, 1]} : vector<48x1xf32> to vector<16x1xf32>
    %205 = arith.addf %204, %151 : vector<16x1xf32>
    %206 = arith.mulf %194, %205 : vector<16x1xf32>
    %207 = arith.addf %203, %206 : vector<16x1xf32>
    %208 = math.tanh %207 : vector<16x1xf32>
    %209 = arith.subf %184, %208 : vector<16x1xf32>
    %210 = arith.mulf %202, %209 : vector<16x1xf32>
    %211 = arith.addf %208, %210 : vector<16x1xf32>
    %212 = vector.extract_strided_slice %152 {offsets = [0, 1], sizes = [16, 1], strides = [1, 1]} : vector<16x4xf32> to vector<16x1xf32>
    %213 = arith.subf %211, %184 : vector<16x1xf32>
    %214 = arith.mulf %212, %213 : vector<16x1xf32>
    %215 = arith.addf %184, %214 : vector<16x1xf32>
    %216 = vector.extract_strided_slice %149 {offsets = [0, 2], sizes = [48, 1], strides = [1, 1]} : vector<48x4xf32> to vector<48x1xf32>
    %cst_100 = arith.constant dense<0.000000e+00> : vector<48x1xf32>
    %217 = tpu.matmul %150, %215, %cst_100 {dimension_numbers = #tpu.dot_dimension_numbers<[1], [0], [0], [1], [0, 0, 1, 1], [], []>} : vector<48x16xf32>, vector<16x1xf32>, vector<48x1xf32> -> vector<48x1xf32>
    %218 = vector.extract_strided_slice %216 {offsets = [0, 0], sizes = [16, 1], strides = [1, 1]} : vector<48x1xf32> to vector<16x1xf32>
    %219 = vector.extract_strided_slice %217 {offsets = [0, 0], sizes = [16, 1], strides = [1, 1]} : vector<48x1xf32> to vector<16x1xf32>
    %220 = arith.addf %218, %219 : vector<16x1xf32>
    %221 = arith.negf %220 : vector<16x1xf32>
    %222 = math.exp %221 : vector<16x1xf32>
    %cst_101 = arith.constant 1.000000e+00 : f32
    %223 = vector.broadcast %cst_101 : f32 to vector<16x1xf32>
    %224 = arith.addf %223, %222 : vector<16x1xf32>
    %225 = arith.divf %223, %224 : vector<16x1xf32>
    %226 = vector.extract_strided_slice %216 {offsets = [16, 0], sizes = [16, 1], strides = [1, 1]} : vector<48x1xf32> to vector<16x1xf32>
    %227 = vector.extract_strided_slice %217 {offsets = [16, 0], sizes = [16, 1], strides = [1, 1]} : vector<48x1xf32> to vector<16x1xf32>
    %228 = arith.addf %226, %227 : vector<16x1xf32>
    %229 = arith.negf %228 : vector<16x1xf32>
    %230 = math.exp %229 : vector<16x1xf32>
    %cst_102 = arith.constant 1.000000e+00 : f32
    %231 = vector.broadcast %cst_102 : f32 to vector<16x1xf32>
    %232 = arith.addf %231, %230 : vector<16x1xf32>
    %233 = arith.divf %231, %232 : vector<16x1xf32>
    %234 = vector.extract_strided_slice %216 {offsets = [32, 0], sizes = [16, 1], strides = [1, 1]} : vector<48x1xf32> to vector<16x1xf32>
    %235 = vector.extract_strided_slice %217 {offsets = [32, 0], sizes = [16, 1], strides = [1, 1]} : vector<48x1xf32> to vector<16x1xf32>
    %236 = arith.addf %235, %151 : vector<16x1xf32>
    %237 = arith.mulf %225, %236 : vector<16x1xf32>
    %238 = arith.addf %234, %237 : vector<16x1xf32>
    %239 = math.tanh %238 : vector<16x1xf32>
    %240 = arith.subf %215, %239 : vector<16x1xf32>
    %241 = arith.mulf %233, %240 : vector<16x1xf32>
    %242 = arith.addf %239, %241 : vector<16x1xf32>
    %243 = vector.extract_strided_slice %152 {offsets = [0, 2], sizes = [16, 1], strides = [1, 1]} : vector<16x4xf32> to vector<16x1xf32>
    %244 = arith.subf %242, %215 : vector<16x1xf32>
    %245 = arith.mulf %243, %244 : vector<16x1xf32>
    %246 = arith.addf %215, %245 : vector<16x1xf32>
    %247 = vector.extract_strided_slice %149 {offsets = [0, 3], sizes = [48, 1], strides = [1, 1]} : vector<48x4xf32> to vector<48x1xf32>
    %cst_103 = arith.constant dense<0.000000e+00> : vector<48x1xf32>
    %248 = tpu.matmul %150, %246, %cst_103 {dimension_numbers = #tpu.dot_dimension_numbers<[1], [0], [0], [1], [0, 0, 1, 1], [], []>} : vector<48x16xf32>, vector<16x1xf32>, vector<48x1xf32> -> vector<48x1xf32>
    %249 = vector.extract_strided_slice %247 {offsets = [0, 0], sizes = [16, 1], strides = [1, 1]} : vector<48x1xf32> to vector<16x1xf32>
    %250 = vector.extract_strided_slice %248 {offsets = [0, 0], sizes = [16, 1], strides = [1, 1]} : vector<48x1xf32> to vector<16x1xf32>
    %251 = arith.addf %249, %250 : vector<16x1xf32>
    %252 = arith.negf %251 : vector<16x1xf32>
    %253 = math.exp %252 : vector<16x1xf32>
    %cst_104 = arith.constant 1.000000e+00 : f32
    %254 = vector.broadcast %cst_104 : f32 to vector<16x1xf32>
    %255 = arith.addf %254, %253 : vector<16x1xf32>
    %256 = arith.divf %254, %255 : vector<16x1xf32>
    %257 = vector.extract_strided_slice %247 {offsets = [16, 0], sizes = [16, 1], strides = [1, 1]} : vector<48x1xf32> to vector<16x1xf32>
    %258 = vector.extract_strided_slice %248 {offsets = [16, 0], sizes = [16, 1], strides = [1, 1]} : vector<48x1xf32> to vector<16x1xf32>
    %259 = arith.addf %257, %258 : vector<16x1xf32>
    %260 = arith.negf %259 : vector<16x1xf32>
    %261 = math.exp %260 : vector<16x1xf32>
    %cst_105 = arith.constant 1.000000e+00 : f32
    %262 = vector.broadcast %cst_105 : f32 to vector<16x1xf32>
    %263 = arith.addf %262, %261 : vector<16x1xf32>
    %264 = arith.divf %262, %263 : vector<16x1xf32>
    %265 = vector.extract_strided_slice %247 {offsets = [32, 0], sizes = [16, 1], strides = [1, 1]} : vector<48x1xf32> to vector<16x1xf32>
    %266 = vector.extract_strided_slice %248 {offsets = [32, 0], sizes = [16, 1], strides = [1, 1]} : vector<48x1xf32> to vector<16x1xf32>
    %267 = arith.addf %266, %151 : vector<16x1xf32>
    %268 = arith.mulf %256, %267 : vector<16x1xf32>
    %269 = arith.addf %265, %268 : vector<16x1xf32>
    %270 = math.tanh %269 : vector<16x1xf32>
    %271 = arith.subf %246, %270 : vector<16x1xf32>
    %272 = arith.mulf %264, %271 : vector<16x1xf32>
    %273 = arith.addf %270, %272 : vector<16x1xf32>
    %274 = vector.extract_strided_slice %152 {offsets = [0, 3], sizes = [16, 1], strides = [1, 1]} : vector<16x4xf32> to vector<16x1xf32>
    %275 = arith.subf %273, %246 : vector<16x1xf32>
    %276 = arith.mulf %274, %275 : vector<16x1xf32>
    %277 = arith.addf %246, %276 : vector<16x1xf32>
    %c0_106 = arith.constant 0 : index
    %c0_107 = arith.constant 0 : index
    %278 = vector.load %arg21[%c0_106, %c0_107] : memref<4x8xf32, #tpu.memory_space<vmem>>, vector<4x8xf32>
    %279 = vector.extract_strided_slice %277 {offsets = [0, 0], sizes = [8, 1], strides = [1, 1]} : vector<16x1xf32> to vector<8x1xf32>
    %cst_108 = arith.constant dense<0.000000e+00> : vector<4x1xf32>
    %280 = tpu.matmul %278, %279, %cst_108 {dimension_numbers = #tpu.dot_dimension_numbers<[1], [0], [0], [1], [0, 0, 1, 1], [], []>} : vector<4x8xf32>, vector<8x1xf32>, vector<4x1xf32> -> vector<4x1xf32>
    %281 = vector.extract_strided_slice %277 {offsets = [8, 0], sizes = [8, 1], strides = [1, 1]} : vector<16x1xf32> to vector<8x1xf32>
    %cst_109 = arith.constant dense<0.000000e+00> : vector<4x1xf32>
    %282 = tpu.matmul %278, %281, %cst_109 {dimension_numbers = #tpu.dot_dimension_numbers<[1], [0], [0], [1], [0, 0, 1, 1], [], []>} : vector<4x8xf32>, vector<8x1xf32>, vector<4x1xf32> -> vector<4x1xf32>
    %283 = tpu.concatenate %280, %282 in 1 : vector<4x1xf32>, vector<4x1xf32> -> vector<4x2xf32>
    %c0_110 = arith.constant 0 : index
    %c0_111 = arith.constant 0 : index
    %284 = vector.load %arg22[%c0_110, %c0_111] : memref<4x1xf32, #tpu.memory_space<vmem>>, vector<4x1xf32>
    %285 = vector.broadcast %284 : vector<4x1xf32> to vector<4x2xf32>
    %286 = arith.addf %283, %285 : vector<4x2xf32>
    %cst_112 = arith.constant dense<0xFF800000> : vector<4xf32>
    %287 = vector.multi_reduction <maximumf>, %286, %cst_112 [1] : vector<4x2xf32> to vector<4xf32>
    %288 = vector.shape_cast %287 : vector<4xf32> to vector<4x1xf32>
    %289 = vector.broadcast %288 : vector<4x1xf32> to vector<4x2xf32>
    %290 = arith.subf %286, %289 : vector<4x2xf32>
    %291 = math.exp %290 : vector<4x2xf32>
    %cst_113 = arith.constant dense<0.000000e+00> : vector<4xf32>
    %292 = vector.multi_reduction <add>, %291, %cst_113 [1] : vector<4x2xf32> to vector<4xf32>
    %293 = vector.shape_cast %292 : vector<4xf32> to vector<4x1xf32>
    %294 = vector.broadcast %293 : vector<4x1xf32> to vector<4x2xf32>
    %295 = arith.divf %291, %294 : vector<4x2xf32>
    %c0_114 = arith.constant 0 : index
    %c0_115 = arith.constant 0 : index
    %296 = vector.load %arg23[%c0_114, %c0_115] : memref<8x4xf32, #tpu.memory_space<vmem>>, vector<8x4xf32>
    %cst_116 = arith.constant dense<0.000000e+00> : vector<8x2xf32>
    %297 = tpu.matmul %296, %295, %cst_116 {dimension_numbers = #tpu.dot_dimension_numbers<[1], [0], [0], [1], [0, 0, 1, 1], [], []>} : vector<8x4xf32>, vector<4x2xf32>, vector<8x2xf32> -> vector<8x2xf32>
    %c0_117 = arith.constant 0 : index
    %c0_118 = arith.constant 0 : index
    %298 = vector.load %arg24[%c0_117, %c0_118] : memref<8x1xf32, #tpu.memory_space<vmem>>, vector<8x1xf32>
    %299 = vector.broadcast %298 : vector<8x1xf32> to vector<8x2xf32>
    %300 = arith.addf %297, %299 : vector<8x2xf32>
    %c0_119 = arith.constant 0 : index
    %c0_120 = arith.constant 0 : index
    %301 = vector.load %arg25[%c0_119, %c0_120] : memref<8x2xf32, #tpu.memory_space<vmem>>, vector<8x2xf32>
    tpu.vector_store %arg25[%c0_119, %c0_120], %300 {strides = array<i32>} : memref<8x2xf32, #tpu.memory_space<vmem>>, vector<8x2xf32>,
    return
  }
}

</mosaic_0001>

<llo_original>
// kernel: utterance_level_prosody_encoder.1
$region0: #{utterance_level_prosody_encoder.1}
  #allocation0 [shape = 'u32[]', space=smem, size = 0x4, offset = 0x4, fixed_abs, tag = 'smem constant byte address 0x4 - core index']
  #allocation1 [shape = 'u32[72,128]{1,0:T(1,128)}', space=vmem, size = 0x9000, scoped, tag = 'internal scratch']
  %s0 = inlined_call_operand.vmem [shape: bf16[20,16], index: 0, kind: input, shape index: {}]
  %s1 = inlined_call_operand.vmem [shape: bf16[48,20], index: 1, kind: input, shape index: {}]
  %s2 = inlined_call_operand.vmem [shape: bf16[3,16,16], index: 2, kind: input, shape index: {}]
  %s3 = inlined_call_operand.vmem [shape: f32[16,1], index: 3, kind: input, shape index: {}]
  %s4 = inlined_call_operand.vmem [shape: f32[16,1], index: 4, kind: input, shape index: {}]
  %s5 = inlined_call_operand.vmem [shape: f32[16,1], index: 5, kind: input, shape index: {}]
  %s6 = inlined_call_operand.vmem [shape: bf16[48,16], index: 6, kind: input, shape index: {}]
  %s7 = inlined_call_operand.vmem [shape: bf16[3,16,8], index: 7, kind: input, shape index: {}]
  %s8 = inlined_call_operand.vmem [shape: f32[16,1], index: 8, kind: input, shape index: {}]
  %s9 = inlined_call_operand.vmem [shape: f32[16,1], index: 9, kind: input, shape index: {}]
  %s10 = inlined_call_operand.vmem [shape: f32[16,1], index: 10, kind: input, shape index: {}]
  %s11 = inlined_call_operand.vmem [shape: bf16[96,16], index: 11, kind: input, shape index: {}]
  %s12 = inlined_call_operand.vmem [shape: bf16[3,8,4], index: 12, kind: input, shape index: {}]
  %s13 = inlined_call_operand.vmem [shape: f32[32,1], index: 13, kind: input, shape index: {}]
  %s14 = inlined_call_operand.vmem [shape: f32[32,1], index: 14, kind: input, shape index: {}]
  %s15 = inlined_call_operand.vmem [shape: f32[32,1], index: 15, kind: input, shape index: {}]
  %s16 = inlined_call_operand.vmem [shape: bf16[48,32], index: 16, kind: input, shape index: {}]
  %s17 = inlined_call_operand.vmem [shape: f32[48,1], index: 17, kind: input, shape index: {}]
  %s18 = inlined_call_operand.vmem [shape: f32[48,16], index: 18, kind: input, shape index: {}]
  %s19 = inlined_call_operand.vmem [shape: f32[16,1], index: 19, kind: input, shape index: {}]
  %s20 = inlined_call_operand.vmem [shape: f32[16,4], index: 20, kind: input, shape index: {}]
  %s21 = inlined_call_operand.vmem [shape: f32[4,8], index: 21, kind: input, shape index: {}]
  %s22 = inlined_call_operand.vmem [shape: f32[4,1], index: 22, kind: input, shape index: {}]
  %s23 = inlined_call_operand.vmem [shape: f32[8,4], index: 23, kind: input, shape index: {}]
  %s24 = inlined_call_operand.vmem [shape: f32[8,1], index: 24, kind: input, shape index: {}]
  %s25 = inlined_call_operand.vmem [shape: f32[8,2], index: 25, kind: output, shape index: {}]
  %s26 = sld [smem:[#allocation0]]
  $region110: #{utterance_level_prosody_encoder.1} parent=0
    _
  %s28 = ssub.s32 1, %s26
  %s29 = scalar_select 0, %s28, %s26
  // Predicated region
  $region2: #{utterance_level_prosody_encoder.1} parent=0 // pred_check
    _
  $region3: #{utterance_level_prosody_encoder.1} parent=0 // pred_check_branch
    %31 = sbr.rel (0) target = $region5
  $region4: #{utterance_level_prosody_encoder.1} parent=0 // pred_region
    _
  $region5: #{utterance_level_prosody_encoder.1} parent=0 // pred_fallthru
    _
  // Predicated region
  $region6: #{utterance_level_prosody_encoder.1} parent=0 // pred_check
    _
  $region7: #{utterance_level_prosody_encoder.1} parent=0 // pred_check_branch
    %33 = sbr.rel (0) target = $region9
  $region8: #{utterance_level_prosody_encoder.1} parent=0 // pred_region
    _
  $region9: #{utterance_level_prosody_encoder.1} parent=0 // pred_fallthru
    _
  // Predicated region
  $region10: #{utterance_level_prosody_encoder.1} parent=0 // pred_check
    _
  $region11: #{utterance_level_prosody_encoder.1} parent=0 // pred_check_branch
    %35 = sbr.rel (0) target = $region13
  $region12: #{utterance_level_prosody_encoder.1} parent=0 // pred_region
    _
  $region13: #{utterance_level_prosody_encoder.1} parent=0 // pred_fallthru
    _
  // Predicated region
  $region14: #{utterance_level_prosody_encoder.1} parent=0 // pred_check
    _
  $region15: #{utterance_level_prosody_encoder.1} parent=0 // pred_check_branch
    %37 = sbr.rel (0) target = $region17
  $region16: #{utterance_level_prosody_encoder.1} parent=0 // pred_region
    _
  $region17: #{utterance_level_prosody_encoder.1} parent=0 // pred_fallthru
    _
  // Predicated region
  $region18: #{utterance_level_prosody_encoder.1} parent=0 // pred_check
    _
  $region19: #{utterance_level_prosody_encoder.1} parent=0 // pred_check_branch
    %39 = sbr.rel (0) target = $region21
  $region20: #{utterance_level_prosody_encoder.1} parent=0 // pred_region
    _
  $region21: #{utterance_level_prosody_encoder.1} parent=0 // pred_fallthru
    _
  // Predicated region
  $region22: #{utterance_level_prosody_encoder.1} parent=0 // pred_check
    _
  $region23: #{utterance_level_prosody_encoder.1} parent=0 // pred_check_branch
    %41 = sbr.rel (0) target = $region25
  $region24: #{utterance_level_prosody_encoder.1} parent=0 // pred_region
    _
  $region25: #{utterance_level_prosody_encoder.1} parent=0 // pred_fallthru
    _
  // Predicated region
  $region26: #{utterance_level_prosody_encoder.1} parent=0 // pred_check
    _
  $region27: #{utterance_level_prosody_encoder.1} parent=0 // pred_check_branch
    %43 = sbr.rel (0) target = $region29
  $region28: #{utterance_level_prosody_encoder.1} parent=0 // pred_region
    _
  $region29: #{utterance_level_prosody_encoder.1} parent=0 // pred_fallthru
    _
  // Predicated region
  $region30: #{utterance_level_prosody_encoder.1} parent=0 // pred_check
    _
  $region31: #{utterance_level_prosody_encoder.1} parent=0 // pred_check_branch
    %45 = sbr.rel (0) target = $region33
  $region32: #{utterance_level_prosody_encoder.1} parent=0 // pred_region
    _
  $region33: #{utterance_level_prosody_encoder.1} parent=0 // pred_fallthru
    _
  // Predicated region
  $region34: #{utterance_level_prosody_encoder.1} parent=0 // pred_check
    _
  $region35: #{utterance_level_prosody_encoder.1} parent=0 // pred_check_branch
    %47 = sbr.rel (0) target = $region37
  $region36: #{utterance_level_prosody_encoder.1} parent=0 // pred_region
    _
  $region37: #{utterance_level_prosody_encoder.1} parent=0 // pred_fallthru
    _
  // Predicated region
  $region38: #{utterance_level_prosody_encoder.1} parent=0 // pred_check
    _
  $region39: #{utterance_level_prosody_encoder.1} parent=0 // pred_check_branch
    %49 = sbr.rel (0) target = $region41
  $region40: #{utterance_level_prosody_encoder.1} parent=0 // pred_region
    _
  $region41: #{utterance_level_prosody_encoder.1} parent=0 // pred_fallthru
    _
  // Predicated region
  $region42: #{utterance_level_prosody_encoder.1} parent=0 // pred_check
    _
  $region43: #{utterance_level_prosody_encoder.1} parent=0 // pred_check_branch
    %51 = sbr.rel (0) target = $region45
  $region44: #{utterance_level_prosody_encoder.1} parent=0 // pred_region
    _
  $region45: #{utterance_level_prosody_encoder.1} parent=0 // pred_fallthru
    _
  // Predicated region
  $region46: #{utterance_level_prosody_encoder.1} parent=0 // pred_check
    _
  $region47: #{utterance_level_prosody_encoder.1} parent=0 // pred_check_branch
    %53 = sbr.rel (0) target = $region49
  $region48: #{utterance_level_prosody_encoder.1} parent=0 // pred_region
    _
  $region49: #{utterance_level_prosody_encoder.1} parent=0 // pred_fallthru
    _
  // Predicated region
  $region50: #{utterance_level_prosody_encoder.1} parent=0 // pred_check
    _
  $region51: #{utterance_level_prosody_encoder.1} parent=0 // pred_check_branch
    %55 = sbr.rel (0) target = $region53
  $region52: #{utterance_level_prosody_encoder.1} parent=0 // pred_region
    _
  $region53: #{utterance_level_prosody_encoder.1} parent=0 // pred_fallthru
    _
  // Predicated region
  $region54: #{utterance_level_prosody_encoder.1} parent=0 // pred_check
    _
  $region55: #{utterance_level_prosody_encoder.1} parent=0 // pred_check_branch
    %57 = sbr.rel (0) target = $region57
  $region56: #{utterance_level_prosody_encoder.1} parent=0 // pred_region
    _
  $region57: #{utterance_level_prosody_encoder.1} parent=0 // pred_fallthru
    _
  // Predicated region
  $region58: #{utterance_level_prosody_encoder.1} parent=0 // pred_check
    _
  $region59: #{utterance_level_prosody_encoder.1} parent=0 // pred_check_branch
    %59 = sbr.rel (0) target = $region61
  $region60: #{utterance_level_prosody_encoder.1} parent=0 // pred_region
    _
  $region61: #{utterance_level_prosody_encoder.1} parent=0 // pred_fallthru
    _
  // Predicated region
  $region62: #{utterance_level_prosody_encoder.1} parent=0 // pred_check
    _
  $region63: #{utterance_level_prosody_encoder.1} parent=0 // pred_check_branch
    %61 = sbr.rel (0) target = $region65
  $region64: #{utterance_level_prosody_encoder.1} parent=0 // pred_region
    _
  $region65: #{utterance_level_prosody_encoder.1} parent=0 // pred_fallthru
    _
  // Predicated region
  $region66: #{utterance_level_prosody_encoder.1} parent=0 // pred_check
    _
  $region67: #{utterance_level_prosody_encoder.1} parent=0 // pred_check_branch
    %63 = sbr.rel (0) target = $region69
  $region68: #{utterance_level_prosody_encoder.1} parent=0 // pred_region
    _
  $region69: #{utterance_level_prosody_encoder.1} parent=0 // pred_fallthru
    _
  // Predicated region
  $region70: #{utterance_level_prosody_encoder.1} parent=0 // pred_check
    _
  $region71: #{utterance_level_prosody_encoder.1} parent=0 // pred_check_branch
    %65 = sbr.rel (0) target = $region73
  $region72: #{utterance_level_prosody_encoder.1} parent=0 // pred_region
    _
  $region73: #{utterance_level_prosody_encoder.1} parent=0 // pred_fallthru
    _
  // Predicated region
  $region74: #{utterance_level_prosody_encoder.1} parent=0 // pred_check
    _
  $region75: #{utterance_level_prosody_encoder.1} parent=0 // pred_check_branch
    %67 = sbr.rel (0) target = $region77
  $region76: #{utterance_level_prosody_encoder.1} parent=0 // pred_region
    _
  $region77: #{utterance_level_prosody_encoder.1} parent=0 // pred_fallthru
    _
  // Predicated region
  $region78: #{utterance_level_prosody_encoder.1} parent=0 // pred_check
    _
  $region79: #{utterance_level_prosody_encoder.1} parent=0 // pred_check_branch
    %69 = sbr.rel (0) target = $region81
  $region80: #{utterance_level_prosody_encoder.1} parent=0 // pred_region
    _
  $region81: #{utterance_level_prosody_encoder.1} parent=0 // pred_fallthru
    _
  // Predicated region
  $region82: #{utterance_level_prosody_encoder.1} parent=0 // pred_check
    _
  $region83: #{utterance_level_prosody_encoder.1} parent=0 // pred_check_branch
    %71 = sbr.rel (0) target = $region85
  $region84: #{utterance_level_prosody_encoder.1} parent=0 // pred_region
    _
  $region85: #{utterance_level_prosody_encoder.1} parent=0 // pred_fallthru
    _
  // Predicated region
  $region86: #{utterance_level_prosody_encoder.1} parent=0 // pred_check
    _
  $region87: #{utterance_level_prosody_encoder.1} parent=0 // pred_check_branch
    %73 = sbr.rel (0) target = $region89
  $region88: #{utterance_level_prosody_encoder.1} parent=0 // pred_region
    _
  $region89: #{utterance_level_prosody_encoder.1} parent=0 // pred_fallthru
    _
  // Predicated region
  $region90: #{utterance_level_prosody_encoder.1} parent=0 // pred_check
    _
  $region91: #{utterance_level_prosody_encoder.1} parent=0 // pred_check_branch
    %75 = sbr.rel (0) target = $region93
  $region92: #{utterance_level_prosody_encoder.1} parent=0 // pred_region
    _
  $region93: #{utterance_level_prosody_encoder.1} parent=0 // pred_fallthru
    _
  // Predicated region
  $region94: #{utterance_level_prosody_encoder.1} parent=0 // pred_check
    _
  $region95: #{utterance_level_prosody_encoder.1} parent=0 // pred_check_branch
    %77 = sbr.rel (0) target = $region97
  $region96: #{utterance_level_prosody_encoder.1} parent=0 // pred_region
    _
  $region97: #{utterance_level_prosody_encoder.1} parent=0 // pred_fallthru
    _
  // Predicated region
  $region98: #{utterance_level_prosody_encoder.1} parent=0 // pred_check
    _
  $region99: #{utterance_level_prosody_encoder.1} parent=0 // pred_check_branch
    %79 = sbr.rel (0) target = $region101
  $region100: #{utterance_level_prosody_encoder.1} parent=0 // pred_region
    _
  $region101: #{utterance_level_prosody_encoder.1} parent=0 // pred_fallthru
    _
  %v81 = vld [vmem:[%s0] sm:$0xf]
  %v82 = vld [vmem:[%s0 + $0x4] sm:$0xf]
  %v83 = vld [vmem:[%s0 + $0x8] sm:$0x3]
  %v84 = vld [vmem:[%s1] sm:$0xf]
  %v85 = vld [vmem:[%s1 + $0x4] sm:$0xf]
  %v86 = vld [vmem:[%s1 + $0x8] sm:$0xf]
  %v87 = vld [vmem:[%s1 + $0xc] sm:$0xf]
  %v88 = vld [vmem:[%s1 + $0x10] sm:$0xf]
  %v89 = vld [vmem:[%s1 + $0x14] sm:$0xf]
  %v96 = vunpack.c.l.b16 %v84
  %v97 = vunpack.c.l.b16 %v85
  %v98 = vunpack.c.l.b16 %v86
  %v99 = vunpack.c.l.b16 %v87
  %v100 = vunpack.c.l.b16 %v88
  %v101 = vunpack.c.l.b16 %v89
  %v102 = vpack.c.b16 %v97, %v96
  %v103 = vpack.c.b16 %v99, %v98
  %v104 = vpack.c.b16 %v101, %v100
  %v108 = vunpack.c.l.b16 %v81
  %v109 = vunpack.c.l.b16 %v82
  %v110 = vunpack.c.l.b16 %v83
  %v111 = vpack.c.b16 %v109, %v108
  %v112 = vpack.c.b16 %v110, %v110
  %vm114 = vcmask 162816
  %v116 = vsel %vm114, %v102, 0
  %v119 = vsel %vm114, %v103, 0
  %v122 = vsel %vm114, %v104, 0
  %vm124 = vcmask 1041408
  %v126 = vsel %vm124, %v112, 0
  %128 = vmatpush.bf16.msra.mxu0 0
  %129 = vmatpush.bf16.msra.mxu0 0
  %130 = vmatpush.bf16.msra.mxu0 0
  %131 = vmatpush.bf16.msra.mxu0 0
  %132 = vmatpush.bf16.msra.mxu0 0
  %133 = vmatpush.bf16.msra.mxu0 0
  %134 = vmatpush.bf16.msra.mxu0 %v126
  %135 = vmatpush.bf16.msra.mxu0 %v111
  %136 = vmatmul.bf16.gmra.mxu0 %v116
  %v137 = vpop.f32.mrf.mxu0
  %v138 = vadd.f32 0.0, %v137
  %v139 = vpop.f32.mrf.mxu0
  %v140 = vadd.f32 0.0, %v139
  %141 = vmatmul.bf16.gmra.mxu0 %v119
  %v142 = vpop.f32.mrf.mxu0
  %v143 = vadd.f32 0.0, %v142
  %v144 = vpop.f32.mrf.mxu0
  %v145 = vadd.f32 0.0, %v144
  %146 = vmatmul.bf16.gmra.mxu0 %v122
  %v147 = vpop.f32.mrf.mxu0
  %v148 = vadd.f32 0.0, %v147
  %v149 = vpop.f32.mrf.mxu0
  %v150 = vadd.f32 0.0, %v149
  %151 = vdwg.mxu0
  %v152 = vpack.c.bf16 %v138, %v138
  %v153 = vpack.c.bf16 %v140, %v140
  %v154 = vpack.c.bf16 %v143, %v143
  %v155 = vpack.c.bf16 %v145, %v145
  %v156 = vpack.c.bf16 %v148, %v148
  %v157 = vpack.c.bf16 %v150, %v150
  %v158 = vld [vmem:[%s2] sm:$0xf]
  %v159 = vld [vmem:[%s2 + $0x4] sm:$0xf]
  %s160 = scalar_lea.vmem %s2, 8
  %v161 = vld [vmem:[%s160] sm:$0xf]
  %v162 = vld [vmem:[%s160 + $0x4] sm:$0xf]
  %v165 = vunpack.c.l.b16 %v154
  %v166 = vunpack.c.l.b16 %v155
  %v167 = vpack.c.b16 %v166, %v165
  %v170 = vunpack.c.l.b16 %v161
  %v171 = vunpack.c.l.b16 %v162
  %v172 = vpack.c.b16 %v171, %v170
  %vm174 = vcmask 130048
  %v176 = vsel %vm174, %v167, 0
  %178 = vmatpush.bf16.msra.mxu0 0
  %179 = vmatpush.bf16.msra.mxu0 0
  %180 = vmatpush.bf16.msra.mxu0 0
  %181 = vmatpush.bf16.msra.mxu0 0
  %182 = vmatpush.bf16.msra.mxu0 0
  %183 = vmatpush.bf16.msra.mxu0 0
  %184 = vmatpush.bf16.msra.mxu0 0
  %185 = vmatpush.bf16.msra.mxu0 %v172
  %186 = vmatmul.bf16.gmra.mxu0 %v176
  %v187 = vpop.f32.mrf.mxu0
  %v188 = vadd.f32 0.0, %v187
  %v189 = vpop.f32.mrf.mxu0
  %v190 = vadd.f32 0.0, %v189
  %191 = vdwg.mxu0
  %v194 = vunpack.c.l.b16 %v152
  %v195 = vunpack.c.l.b16 %v153
  %v196 = vpack.c.b16 %v195, %v194
  %v199 = vunpack.c.l.b16 %v158
  %v200 = vunpack.c.l.b16 %v159
  %v201 = vpack.c.b16 %v200, %v199
  %v204 = vsel %vm174, %v196, 0
  %206 = vmatpush.bf16.msra.mxu0 0
  %207 = vmatpush.bf16.msra.mxu0 0
  %208 = vmatpush.bf16.msra.mxu0 0
  %209 = vmatpush.bf16.msra.mxu0 0
  %210 = vmatpush.bf16.msra.mxu0 0
  %211 = vmatpush.bf16.msra.mxu0 0
  %212 = vmatpush.bf16.msra.mxu0 0
  %213 = vmatpush.bf16.msra.mxu0 %v201
  %214 = vmatmul.bf16.gmra.mxu0 %v204
  %v215 = vpop.f32.mrf.mxu0
  %v216 = vadd.f32 %v188, %v215
  %v217 = vpop.f32.mrf.mxu0
  %v218 = vadd.f32 %v190, %v217
  %219 = vdwg.mxu0
  %s220 = scalar_lea.vmem %s2, 16
  %v221 = vld [vmem:[%s220] sm:$0xf]
  %v222 = vld [vmem:[%s220 + $0x4] sm:$0xf]
  %v225 = vunpack.c.l.b16 %v156
  %v226 = vunpack.c.l.b16 %v157
  %v227 = vpack.c.b16 %v226, %v225
  %v230 = vunpack.c.l.b16 %v221
  %v231 = vunpack.c.l.b16 %v222
  %v232 = vpack.c.b16 %v231, %v230
  %v235 = vsel %vm174, %v227, 0
  %237 = vmatpush.bf16.msra.mxu0 0
  %238 = vmatpush.bf16.msra.mxu0 0
  %239 = vmatpush.bf16.msra.mxu0 0
  %240 = vmatpush.bf16.msra.mxu0 0
  %241 = vmatpush.bf16.msra.mxu0 0
  %242 = vmatpush.bf16.msra.mxu0 0
  %243 = vmatpush.bf16.msra.mxu0 0
  %244 = vmatpush.bf16.msra.mxu0 %v232
  %245 = vmatmul.bf16.gmra.mxu0 %v235
  %v246 = vpop.f32.mrf.mxu0
  %v247 = vadd.f32 0.0, %v246
  %v248 = vpop.f32.mrf.mxu0
  %v249 = vadd.f32 0.0, %v248
  %250 = vdwg.mxu0
  %v251 = vadd.f32 %v216, %v247
  %v252 = vadd.f32 %v218, %v249
  %v253 = vld [vmem:[%s3] sm:$0xff]
  %v254 = vld [vmem:[%s3 + $0x8] sm:$0xff]
  %256 = vset.pattern.permute.xlu0 0
  %257 = vperm.xlu0 %256, %v253
  %v258 = vpop.permute.xlu0 %257
  %261 = vset.pattern.permute.xlu0 0
  %262 = vperm.xlu0 %261, %v254
  %v263 = vpop.permute.xlu0 %262
  %v265 = vadd.f32 %v251, %v258
  %v266 = vadd.f32 %v252, %v263
  %vm267 = vcmp.gt.f32.partialorder %v265, 0.0
  %vm268 = vcmp.gt.f32.partialorder %v266, 0.0
  %v269 = vmul.f32 %v265, 0.3
  %v270 = vmul.f32 %v266, 0.3
  %v271 = vsel %vm267, %v265, %v269
  %v272 = vsel %vm268, %v266, %v270
  %v273 = vsel %vm174, %v271, 0.0
  %274 = vadd.xlane.f32.xlu0 %v273
  %v275 = vpop.xlane.xlu0 %274
  %v276 = vsel %vm174, %v272, 0.0
  %277 = vadd.xlane.f32.xlu0 %v276
  %v278 = vpop.xlane.xlu0 %277
  %v279 = vrcp.pop 16.0
  %v280 = vmul.f32 16.0, %v279
  %v281 = vsub.f32 1.0, %v280
  %v282 = vmul.f32 %v279, %v281
  %v283 = vadd.f32 %v279, %v282
  %vm284 = vweird.f32 %v279
  %v285 = vsel %vm284, %v279, %v283
  %v286 = vmul.f32 %v275, %v285
  %v287 = vmul.f32 %v278, %v285
  %v288 = vsub.f32 %v271, %v286
  %v289 = vsub.f32 %v272, %v287
  %v290 = vmul.f32 %v288, %v288
  %v291 = vmul.f32 %v289, %v289
  %v292 = vsel %vm174, %v290, 0.0
  %293 = vadd.xlane.f32.xlu0 %v292
  %v294 = vpop.xlane.xlu0 %293
  %v295 = vsel %vm174, %v291, 0.0
  %296 = vadd.xlane.f32.xlu0 %v295
  %v297 = vpop.xlane.xlu0 %296
  %v298 = vmul.f32 %v294, %v285
  %v299 = vmul.f32 %v297, %v285
  %v300 = vadd.f32 %v298, 1e-05
  %v301 = vadd.f32 %v299, 1e-05
  %v302 = vrsqrt.pop %v300
  %v303 = vmul.f32 %v302, %v300
  %v304 = vmul.f32 %v303, %v302
  %v305 = vmul.f32 0.5, %v304
  %v306 = vsub.f32 1.5, %v305
  %v307 = vmul.f32 %v302, %v306
  %vm308 = vweird.f32 %v300
  %vm309 = vweird.f32 %v302
  %vm310 = vmor %vm308, %vm309
  %v311 = vsel %vm310, %v302, %v307
  %v312 = vrsqrt.pop %v301
  %v313 = vmul.f32 %v312, %v301
  %v314 = vmul.f32 %v313, %v312
  %v315 = vmul.f32 0.5, %v314
  %v316 = vsub.f32 1.5, %v315
  %v317 = vmul.f32 %v312, %v316
  %vm318 = vweird.f32 %v301
  %vm319 = vweird.f32 %v312
  %vm320 = vmor %vm318, %vm319
  %v321 = vsel %vm320, %v312, %v317
  %v322 = vmul.f32 %v288, %v311
  %v323 = vmul.f32 %v289, %v321
  %v324 = vld [vmem:[%s4] sm:$0xff]
  %v325 = vld [vmem:[%s4 + $0x8] sm:$0xff]
  %327 = vset.pattern.permute.xlu0 0
  %328 = vperm.xlu0 %327, %v324
  %v329 = vpop.permute.xlu0 %328
  %332 = vset.pattern.permute.xlu0 0
  %333 = vperm.xlu0 %332, %v325
  %v334 = vpop.permute.xlu0 %333
  %v336 = vmul.f32 %v322, %v329
  %v337 = vmul.f32 %v323, %v334
  %v338 = vld [vmem:[%s5] sm:$0xff]
  %v339 = vld [vmem:[%s5 + $0x8] sm:$0xff]
  %341 = vset.pattern.permute.xlu0 0
  %342 = vperm.xlu0 %341, %v338
  %v343 = vpop.permute.xlu0 %342
  %346 = vset.pattern.permute.xlu0 0
  %347 = vperm.xlu0 %346, %v339
  %v348 = vpop.permute.xlu0 %347
  %v350 = vadd.f32 %v336, %v343
  %v351 = vadd.f32 %v337, %v348
  %v352 = vpack.c.bf16 %v351, %v350
  %v353 = vld [vmem:[%s6] sm:$0xf]
  %v354 = vld [vmem:[%s6 + $0x4] sm:$0xf]
  %v355 = vld [vmem:[%s6 + $0x8] sm:$0xf]
  %v356 = vld [vmem:[%s6 + $0xc] sm:$0xf]
  %v357 = vld [vmem:[%s6 + $0x10] sm:$0xf]
  %v358 = vld [vmem:[%s6 + $0x14] sm:$0xf]
  %v365 = vunpack.c.l.b16 %v353
  %v366 = vunpack.c.l.b16 %v354
  %v367 = vunpack.c.l.b16 %v355
  %v368 = vunpack.c.l.b16 %v356
  %v369 = vunpack.c.l.b16 %v357
  %v370 = vunpack.c.l.b16 %v358
  %v371 = vpack.c.b16 %v366, %v365
  %v372 = vpack.c.b16 %v368, %v367
  %v373 = vpack.c.b16 %v370, %v369
  %v375 = vsel %vm174, %v371, 0
  %v378 = vsel %vm174, %v372, 0
  %v381 = vsel %vm174, %v373, 0
  %383 = vmatpush.bf16.msra.mxu0 0
  %384 = vmatpush.bf16.msra.mxu0 0
  %385 = vmatpush.bf16.msra.mxu0 0
  %386 = vmatpush.bf16.msra.mxu0 0
  %387 = vmatpush.bf16.msra.mxu0 0
  %388 = vmatpush.bf16.msra.mxu0 0
  %389 = vmatpush.bf16.msra.mxu0 0
  %390 = vmatpush.bf16.msra.mxu0 %v352
  %391 = vmatmul.bf16.gmra.mxu0 %v375
  %v392 = vpop.f32.mrf.mxu0
  %v393 = vadd.f32 0.0, %v392
  %v394 = vpop.f32.mrf.mxu0
  %v395 = vadd.f32 0.0, %v394
  %396 = vmatmul.bf16.gmra.mxu0 %v378
  %v397 = vpop.f32.mrf.mxu0
  %v398 = vadd.f32 0.0, %v397
  %v399 = vpop.f32.mrf.mxu0
  %v400 = vadd.f32 0.0, %v399
  %401 = vmatmul.bf16.gmra.mxu0 %v381
  %v402 = vpop.f32.mrf.mxu0
  %v403 = vadd.f32 0.0, %v402
  %v404 = vpop.f32.mrf.mxu0
  %v405 = vadd.f32 0.0, %v404
  %406 = vdwg.mxu0
  %v407 = vpack.c.bf16 %v393, %v393
  %v408 = vpack.c.bf16 %v395, %v395
  %v409 = vpack.c.bf16 %v398, %v398
  %v410 = vpack.c.bf16 %v400, %v400
  %v411 = vpack.c.bf16 %v403, %v403
  %v412 = vpack.c.bf16 %v405, %v405
  %v413 = vld [vmem:[%s7] sm:$0xf]
  %v414 = vld [vmem:[%s7 + $0x4] sm:$0xf]
  %s415 = scalar_lea.vmem %s7, 8
  %v416 = vld [vmem:[%s415] sm:$0xf]
  %v417 = vld [vmem:[%s415 + $0x4] sm:$0xf]
  %v420 = vunpack.c.l.b16 %v409
  %v421 = vunpack.c.l.b16 %v410
  %v422 = vpack.c.b16 %v421, %v420
  %v425 = vunpack.c.l.b16 %v416
  %v426 = vunpack.c.l.b16 %v417
  %v427 = vpack.c.b16 %v426, %v425
  %v430 = vsel %vm174, %v422, 0
  %432 = vmatpush.bf16.msra.mxu0 0
  %433 = vmatpush.bf16.msra.mxu0 0
  %434 = vmatpush.bf16.msra.mxu0 0
  %435 = vmatpush.bf16.msra.mxu0 0
  %436 = vmatpush.bf16.msra.mxu0 0
  %437 = vmatpush.bf16.msra.mxu0 0
  %438 = vmatpush.bf16.msra.mxu0 0
  %439 = vmatpush.bf16.msra.mxu0 %v427
  %440 = vmatmul.bf16.gmra.mxu0 %v430
  %v441 = vpop.f32.mrf.mxu0
  %v442 = vadd.f32 0.0, %v441
  %v443 = vpop.f32.mrf.mxu0
  %v444 = vadd.f32 0.0, %v443
  %445 = vdwg.mxu0
  %v448 = vunpack.c.l.b16 %v407
  %v449 = vunpack.c.l.b16 %v408
  %v450 = vpack.c.b16 %v449, %v448
  %v453 = vunpack.c.l.b16 %v413
  %v454 = vunpack.c.l.b16 %v414
  %v455 = vpack.c.b16 %v454, %v453
  %v458 = vsel %vm174, %v450, 0
  %460 = vmatpush.bf16.msra.mxu0 0
  %461 = vmatpush.bf16.msra.mxu0 0
  %462 = vmatpush.bf16.msra.mxu0 0
  %463 = vmatpush.bf16.msra.mxu0 0
  %464 = vmatpush.bf16.msra.mxu0 0
  %465 = vmatpush.bf16.msra.mxu0 0
  %466 = vmatpush.bf16.msra.mxu0 0
  %467 = vmatpush.bf16.msra.mxu0 %v455
  %468 = vmatmul.bf16.gmra.mxu0 %v458
  %v469 = vpop.f32.mrf.mxu0
  %v470 = vadd.f32 %v442, %v469
  %v471 = vpop.f32.mrf.mxu0
  %v472 = vadd.f32 %v444, %v471
  %473 = vdwg.mxu0
  %s474 = scalar_lea.vmem %s7, 16
  %v475 = vld [vmem:[%s474] sm:$0xf]
  %v476 = vld [vmem:[%s474 + $0x4] sm:$0xf]
  %v479 = vunpack.c.l.b16 %v411
  %v480 = vunpack.c.l.b16 %v412
  %v481 = vpack.c.b16 %v480, %v479
  %v484 = vunpack.c.l.b16 %v475
  %v485 = vunpack.c.l.b16 %v476
  %v486 = vpack.c.b16 %v485, %v484
  %v489 = vsel %vm174, %v481, 0
  %491 = vmatpush.bf16.msra.mxu0 0
  %492 = vmatpush.bf16.msra.mxu0 0
  %493 = vmatpush.bf16.msra.mxu0 0
  %494 = vmatpush.bf16.msra.mxu0 0
  %495 = vmatpush.bf16.msra.mxu0 0
  %496 = vmatpush.bf16.msra.mxu0 0
  %497 = vmatpush.bf16.msra.mxu0 0
  %498 = vmatpush.bf16.msra.mxu0 %v486
  %499 = vmatmul.bf16.gmra.mxu0 %v489
  %v500 = vpop.f32.mrf.mxu0
  %v501 = vadd.f32 0.0, %v500
  %v502 = vpop.f32.mrf.mxu0
  %v503 = vadd.f32 0.0, %v502
  %504 = vdwg.mxu0
  %v505 = vadd.f32 %v470, %v501
  %v506 = vadd.f32 %v472, %v503
  %v507 = vld [vmem:[%s8] sm:$0xff]
  %v508 = vld [vmem:[%s8 + $0x8] sm:$0xff]
  %510 = vset.pattern.permute.xlu0 0
  %511 = vperm.xlu0 %510, %v507
  %v512 = vpop.permute.xlu0 %511
  %515 = vset.pattern.permute.xlu0 0
  %516 = vperm.xlu0 %515, %v508
  %v517 = vpop.permute.xlu0 %516
  %v519 = vadd.f32 %v505, %v512
  %v520 = vadd.f32 %v506, %v517
  %vm521 = vcmp.gt.f32.partialorder %v519, 0.0
  %vm522 = vcmp.gt.f32.partialorder %v520, 0.0
  %v523 = vmul.f32 %v519, 0.3
  %v524 = vmul.f32 %v520, 0.3
  %v525 = vsel %vm521, %v519, %v523
  %v526 = vsel %vm522, %v520, %v524
  %vm527 = vcmask 64512
  %v528 = vsel %vm527, %v525, 0.0
  %529 = vadd.xlane.f32.xlu0 %v528
  %v530 = vpop.xlane.xlu0 %529
  %v531 = vsel %vm527, %v526, 0.0
  %532 = vadd.xlane.f32.xlu0 %v531
  %v533 = vpop.xlane.xlu0 %532
  %v534 = vrcp.pop 8.0
  %v535 = vmul.f32 8.0, %v534
  %v536 = vsub.f32 1.0, %v535
  %v537 = vmul.f32 %v534, %v536
  %v538 = vadd.f32 %v534, %v537
  %vm539 = vweird.f32 %v534
  %v540 = vsel %vm539, %v534, %v538
  %v541 = vmul.f32 %v530, %v540
  %v542 = vmul.f32 %v533, %v540
  %v543 = vsub.f32 %v525, %v541
  %v544 = vsub.f32 %v526, %v542
  %v545 = vmul.f32 %v543, %v543
  %v546 = vmul.f32 %v544, %v544
  %v547 = vsel %vm527, %v545, 0.0
  %548 = vadd.xlane.f32.xlu0 %v547
  %v549 = vpop.xlane.xlu0 %548
  %v550 = vsel %vm527, %v546, 0.0
  %551 = vadd.xlane.f32.xlu0 %v550
  %v552 = vpop.xlane.xlu0 %551
  %v553 = vmul.f32 %v549, %v540
  %v554 = vmul.f32 %v552, %v540
  %v555 = vadd.f32 %v553, 1e-05
  %v556 = vadd.f32 %v554, 1e-05
  %v557 = vrsqrt.pop %v555
  %v558 = vmul.f32 %v557, %v555
  %v559 = vmul.f32 %v558, %v557
  %v560 = vmul.f32 0.5, %v559
  %v561 = vsub.f32 1.5, %v560
  %v562 = vmul.f32 %v557, %v561
  %vm563 = vweird.f32 %v555
  %vm564 = vweird.f32 %v557
  %vm565 = vmor %vm563, %vm564
  %v566 = vsel %vm565, %v557, %v562
  %v567 = vrsqrt.pop %v556
  %v568 = vmul.f32 %v567, %v556
  %v569 = vmul.f32 %v568, %v567
  %v570 = vmul.f32 0.5, %v569
  %v571 = vsub.f32 1.5, %v570
  %v572 = vmul.f32 %v567, %v571
  %vm573 = vweird.f32 %v556
  %vm574 = vweird.f32 %v567
  %vm575 = vmor %vm573, %vm574
  %v576 = vsel %vm575, %v567, %v572
  %v577 = vmul.f32 %v543, %v566
  %v578 = vmul.f32 %v544, %v576
  %v579 = vld [vmem:[%s9] sm:$0xff]
  %v580 = vld [vmem:[%s9 + $0x8] sm:$0xff]
  %582 = vset.pattern.permute.xlu0 0
  %583 = vperm.xlu0 %582, %v579
  %v584 = vpop.permute.xlu0 %583
  %587 = vset.pattern.permute.xlu0 0
  %588 = vperm.xlu0 %587, %v580
  %v589 = vpop.permute.xlu0 %588
  %v591 = vmul.f32 %v577, %v584
  %v592 = vmul.f32 %v578, %v589
  %v593 = vld [vmem:[%s10] sm:$0xff]
  %v594 = vld [vmem:[%s10 + $0x8] sm:$0xff]
  %596 = vset.pattern.permute.xlu0 0
  %597 = vperm.xlu0 %596, %v593
  %v598 = vpop.permute.xlu0 %597
  %601 = vset.pattern.permute.xlu0 0
  %602 = vperm.xlu0 %601, %v594
  %v603 = vpop.permute.xlu0 %602
  %v605 = vadd.f32 %v591, %v598
  %v606 = vadd.f32 %v592, %v603
  %v607 = vpack.c.bf16 %v606, %v605
  %v608 = vld [vmem:[%s11] sm:$0xf]
  %v609 = vld [vmem:[%s11 + $0x4] sm:$0xf]
  %v610 = vld [vmem:[%s11 + $0x8] sm:$0xf]
  %v611 = vld [vmem:[%s11 + $0xc] sm:$0xf]
  %v612 = vld [vmem:[%s11 + $0x10] sm:$0xf]
  %v613 = vld [vmem:[%s11 + $0x14] sm:$0xf]
  %v614 = vld [vmem:[%s11 + $0x18] sm:$0xf]
  %v615 = vld [vmem:[%s11 + $0x1c] sm:$0xf]
  %v616 = vld [vmem:[%s11 + $0x20] sm:$0xf]
  %v617 = vld [vmem:[%s11 + $0x24] sm:$0xf]
  %v618 = vld [vmem:[%s11 + $0x28] sm:$0xf]
  %v619 = vld [vmem:[%s11 + $0x2c] sm:$0xf]
  %v632 = vunpack.c.l.b16 %v608
  %v633 = vunpack.c.l.b16 %v609
  %v634 = vunpack.c.l.b16 %v610
  %v635 = vunpack.c.l.b16 %v611
  %v636 = vunpack.c.l.b16 %v612
  %v637 = vunpack.c.l.b16 %v613
  %v638 = vunpack.c.l.b16 %v614
  %v639 = vunpack.c.l.b16 %v615
  %v640 = vunpack.c.l.b16 %v616
  %v641 = vunpack.c.l.b16 %v617
  %v642 = vunpack.c.l.b16 %v618
  %v643 = vunpack.c.l.b16 %v619
  %v644 = vpack.c.b16 %v633, %v632
  %v645 = vpack.c.b16 %v635, %v634
  %v646 = vpack.c.b16 %v637, %v636
  %v647 = vpack.c.b16 %v639, %v638
  %v648 = vpack.c.b16 %v641, %v640
  %v649 = vpack.c.b16 %v643, %v642
  %v651 = vsel %vm174, %v644, 0
  %v654 = vsel %vm174, %v645, 0
  %v657 = vsel %vm174, %v646, 0
  %v660 = vsel %vm174, %v647, 0
  %v663 = vsel %vm174, %v648, 0
  %v666 = vsel %vm174, %v649, 0
  %668 = vmatpush.bf16.msra.mxu0 0
  %669 = vmatpush.bf16.msra.mxu0 0
  %670 = vmatpush.bf16.msra.mxu0 0
  %671 = vmatpush.bf16.msra.mxu0 0
  %672 = vmatpush.bf16.msra.mxu0 0
  %673 = vmatpush.bf16.msra.mxu0 0
  %674 = vmatpush.bf16.msra.mxu0 0
  %675 = vmatpush.bf16.msra.mxu0 %v607
  %676 = vmatmul.bf16.gmra.mxu0 %v651
  %v677 = vpop.f32.mrf.mxu0
  %v678 = vadd.f32 0.0, %v677
  %v679 = vpop.f32.mrf.mxu0
  %v680 = vadd.f32 0.0, %v679
  %681 = vmatmul.bf16.gmra.mxu0 %v654
  %v682 = vpop.f32.mrf.mxu0
  %v683 = vadd.f32 0.0, %v682
  %v684 = vpop.f32.mrf.mxu0
  %v685 = vadd.f32 0.0, %v684
  %686 = vmatmul.bf16.gmra.mxu0 %v657
  %v687 = vpop.f32.mrf.mxu0
  %v688 = vadd.f32 0.0, %v687
  %v689 = vpop.f32.mrf.mxu0
  %v690 = vadd.f32 0.0, %v689
  %691 = vmatmul.bf16.gmra.mxu0 %v660
  %v692 = vpop.f32.mrf.mxu0
  %v693 = vadd.f32 0.0, %v692
  %v694 = vpop.f32.mrf.mxu0
  %v695 = vadd.f32 0.0, %v694
  %696 = vmatmul.bf16.gmra.mxu0 %v663
  %v697 = vpop.f32.mrf.mxu0
  %v698 = vadd.f32 0.0, %v697
  %v699 = vpop.f32.mrf.mxu0
  %v700 = vadd.f32 0.0, %v699
  %701 = vmatmul.bf16.gmra.mxu0 %v666
  %v702 = vpop.f32.mrf.mxu0
  %v703 = vadd.f32 0.0, %v702
  %v704 = vpop.f32.mrf.mxu0
  %v705 = vadd.f32 0.0, %v704
  %706 = vdwg.mxu0
  %v707 = vpack.c.bf16 %v678, %v678
  %v708 = vpack.c.bf16 %v680, %v680
  %v709 = vpack.c.bf16 %v683, %v683
  %v710 = vpack.c.bf16 %v685, %v685
  %v711 = vpack.c.bf16 %v688, %v688
  %v712 = vpack.c.bf16 %v690, %v690
  %v713 = vpack.c.bf16 %v693, %v693
  %v714 = vpack.c.bf16 %v695, %v695
  %v715 = vpack.c.bf16 %v698, %v698
  %v716 = vpack.c.bf16 %v700, %v700
  %v717 = vpack.c.bf16 %v703, %v703
  %v718 = vpack.c.bf16 %v705, %v705
  %v719 = vld [vmem:[%s12] sm:$0xf]
  %s720 = scalar_lea.vmem %s12, 4
  %v721 = vld [vmem:[%s720] sm:$0xf]
  %v726 = vunpack.c.l.b16 %v711
  %v727 = vunpack.c.l.b16 %v712
  %v728 = vunpack.c.l.b16 %v713
  %v729 = vunpack.c.l.b16 %v714
  %v730 = vpack.c.b16 %v727, %v726
  %v731 = vpack.c.b16 %v729, %v728
  %v733 = vsel %vm527, %v730, 0
  %v736 = vsel %vm527, %v731, 0
  %vm738 = vcmask 1043456
  %v740 = vsel %vm738, %v721, 0
  %742 = vmatpush.bf16.msra.mxu0 0
  %743 = vmatpush.bf16.msra.mxu0 0
  %744 = vmatpush.bf16.msra.mxu0 0
  %745 = vmatpush.bf16.msra.mxu0 0
  %746 = vmatpush.bf16.msra.mxu0 0
  %747 = vmatpush.bf16.msra.mxu0 0
  %748 = vmatpush.bf16.msra.mxu0 0
  %749 = vmatpush.bf16.msra.mxu0 %v740
  %750 = vmatmul.bf16.gmra.mxu0 %v733
  %v751 = vpop.f32.mrf.mxu0
  %v752 = vadd.f32 0.0, %v751
  %v753 = vpop.f32.mrf.mxu0
  %v754 = vadd.f32 0.0, %v753
  %755 = vmatmul.bf16.gmra.mxu0 %v736
  %v756 = vpop.f32.mrf.mxu0
  %v757 = vadd.f32 0.0, %v756
  %v758 = vpop.f32.mrf.mxu0
  %v759 = vadd.f32 0.0, %v758
  %760 = vdwg.mxu0
  %v765 = vunpack.c.l.b16 %v707
  %v766 = vunpack.c.l.b16 %v708
  %v767 = vunpack.c.l.b16 %v709
  %v768 = vunpack.c.l.b16 %v710
  %v769 = vpack.c.b16 %v766, %v765
  %v770 = vpack.c.b16 %v768, %v767
  %v772 = vsel %vm527, %v769, 0
  %v775 = vsel %vm527, %v770, 0
  %v778 = vsel %vm738, %v719, 0
  %780 = vmatpush.bf16.msra.mxu0 0
  %781 = vmatpush.bf16.msra.mxu0 0
  %782 = vmatpush.bf16.msra.mxu0 0
  %783 = vmatpush.bf16.msra.mxu0 0
  %784 = vmatpush.bf16.msra.mxu0 0
  %785 = vmatpush.bf16.msra.mxu0 0
  %786 = vmatpush.bf16.msra.mxu0 0
  %787 = vmatpush.bf16.msra.mxu0 %v778
  %788 = vmatmul.bf16.gmra.mxu0 %v772
  %v789 = vpop.f32.mrf.mxu0
  %v790 = vadd.f32 %v752, %v789
  %v791 = vpop.f32.mrf.mxu0
  %v792 = vadd.f32 %v754, %v791
  %793 = vmatmul.bf16.gmra.mxu0 %v775
  %v794 = vpop.f32.mrf.mxu0
  %v795 = vadd.f32 %v757, %v794
  %v796 = vpop.f32.mrf.mxu0
  %v797 = vadd.f32 %v759, %v796
  %798 = vdwg.mxu0
  %s799 = scalar_lea.vmem %s12, 8
  %v800 = vld [vmem:[%s799] sm:$0xf]
  %v805 = vunpack.c.l.b16 %v715
  %v806 = vunpack.c.l.b16 %v716
  %v807 = vunpack.c.l.b16 %v717
  %v808 = vunpack.c.l.b16 %v718
  %v809 = vpack.c.b16 %v806, %v805
  %v810 = vpack.c.b16 %v808, %v807
  %v812 = vsel %vm527, %v809, 0
  %v815 = vsel %vm527, %v810, 0
  %v818 = vsel %vm738, %v800, 0
  %820 = vmatpush.bf16.msra.mxu0 0
  %821 = vmatpush.bf16.msra.mxu0 0
  %822 = vmatpush.bf16.msra.mxu0 0
  %823 = vmatpush.bf16.msra.mxu0 0
  %824 = vmatpush.bf16.msra.mxu0 0
  %825 = vmatpush.bf16.msra.mxu0 0
  %826 = vmatpush.bf16.msra.mxu0 0
  %827 = vmatpush.bf16.msra.mxu0 %v818
  %828 = vmatmul.bf16.gmra.mxu0 %v812
  %v829 = vpop.f32.mrf.mxu0
  %v830 = vadd.f32 0.0, %v829
  %v831 = vpop.f32.mrf.mxu0
  %v832 = vadd.f32 0.0, %v831
  %833 = vmatmul.bf16.gmra.mxu0 %v815
  %v834 = vpop.f32.mrf.mxu0
  %v835 = vadd.f32 0.0, %v834
  %v836 = vpop.f32.mrf.mxu0
  %v837 = vadd.f32 0.0, %v836
  %838 = vdwg.mxu0
  %v839 = vadd.f32 %v790, %v830
  %v840 = vadd.f32 %v792, %v832
  %v841 = vadd.f32 %v795, %v835
  %v842 = vadd.f32 %v797, %v837
  %v843 = vld [vmem:[%s13] sm:$0xff]
  %v844 = vld [vmem:[%s13 + $0x8] sm:$0xff]
  %v845 = vld [vmem:[%s13 + $0x10] sm:$0xff]
  %v846 = vld [vmem:[%s13 + $0x18] sm:$0xff]
  %848 = vset.pattern.permute.xlu0 0
  %849 = vperm.xlu0 %848, %v843
  %v850 = vpop.permute.xlu0 %849
  %853 = vset.pattern.permute.xlu0 0
  %854 = vperm.xlu0 %853, %v844
  %v855 = vpop.permute.xlu0 %854
  %858 = vset.pattern.permute.xlu0 0
  %859 = vperm.xlu0 %858, %v845
  %v860 = vpop.permute.xlu0 %859
  %863 = vset.pattern.permute.xlu0 0
  %864 = vperm.xlu0 %863, %v846
  %v865 = vpop.permute.xlu0 %864
  %v867 = vadd.f32 %v839, %v850
  %v868 = vadd.f32 %v840, %v855
  %v869 = vadd.f32 %v841, %v860
  %v870 = vadd.f32 %v842, %v865
  %vm871 = vcmp.gt.f32.partialorder %v867, 0.0
  %vm872 = vcmp.gt.f32.partialorder %v868, 0.0
  %vm873 = vcmp.gt.f32.partialorder %v869, 0.0
  %vm874 = vcmp.gt.f32.partialorder %v870, 0.0
  %v875 = vmul.f32 %v867, 0.3
  %v876 = vmul.f32 %v868, 0.3
  %v877 = vmul.f32 %v869, 0.3
  %v878 = vmul.f32 %v870, 0.3
  %v879 = vsel %vm871, %v867, %v875
  %v880 = vsel %vm872, %v868, %v876
  %v881 = vsel %vm873, %v869, %v877
  %v882 = vsel %vm874, %v870, %v878
  %vm883 = vcmask 31744
  %v884 = vsel %vm883, %v879, 0.0
  %885 = vadd.xlane.f32.xlu0 %v884
  %v886 = vpop.xlane.xlu0 %885
  %v887 = vsel %vm883, %v880, 0.0
  %888 = vadd.xlane.f32.xlu0 %v887
  %v889 = vpop.xlane.xlu0 %888
  %v890 = vsel %vm883, %v881, 0.0
  %891 = vadd.xlane.f32.xlu0 %v890
  %v892 = vpop.xlane.xlu0 %891
  %v893 = vsel %vm883, %v882, 0.0
  %894 = vadd.xlane.f32.xlu0 %v893
  %v895 = vpop.xlane.xlu0 %894
  %v896 = vrcp.pop 4.0
  %v897 = vmul.f32 4.0, %v896
  %v898 = vsub.f32 1.0, %v897
  %v899 = vmul.f32 %v896, %v898
  %v900 = vadd.f32 %v896, %v899
  %vm901 = vweird.f32 %v896
  %v902 = vsel %vm901, %v896, %v900
  %v903 = vmul.f32 %v886, %v902
  %v904 = vmul.f32 %v889, %v902
  %v905 = vmul.f32 %v892, %v902
  %v906 = vmul.f32 %v895, %v902
  %v907 = vsub.f32 %v879, %v903
  %v908 = vsub.f32 %v880, %v904
  %v909 = vsub.f32 %v881, %v905
  %v910 = vsub.f32 %v882, %v906
  %v911 = vmul.f32 %v907, %v907
  %v912 = vmul.f32 %v908, %v908
  %v913 = vmul.f32 %v909, %v909
  %v914 = vmul.f32 %v910, %v910
  %v915 = vsel %vm883, %v911, 0.0
  %916 = vadd.xlane.f32.xlu0 %v915
  %v917 = vpop.xlane.xlu0 %916
  %v918 = vsel %vm883, %v912, 0.0
  %919 = vadd.xlane.f32.xlu0 %v918
  %v920 = vpop.xlane.xlu0 %919
  %v921 = vsel %vm883, %v913, 0.0
  %922 = vadd.xlane.f32.xlu0 %v921
  %v923 = vpop.xlane.xlu0 %922
  %v924 = vsel %vm883, %v914, 0.0
  %925 = vadd.xlane.f32.xlu0 %v924
  %v926 = vpop.xlane.xlu0 %925
  %v927 = vmul.f32 %v917, %v902
  %v928 = vmul.f32 %v920, %v902
  %v929 = vmul.f32 %v923, %v902
  %v930 = vmul.f32 %v926, %v902
  %v931 = vadd.f32 %v927, 1e-05
  %v932 = vadd.f32 %v928, 1e-05
  %v933 = vadd.f32 %v929, 1e-05
  %v934 = vadd.f32 %v930, 1e-05
  %v935 = vrsqrt.pop %v931
  %v936 = vmul.f32 %v935, %v931
  %v937 = vmul.f32 %v936, %v935
  %v938 = vmul.f32 0.5, %v937
  %v939 = vsub.f32 1.5, %v938
  %v940 = vmul.f32 %v935, %v939
  %vm941 = vweird.f32 %v931
  %vm942 = vweird.f32 %v935
  %vm943 = vmor %vm941, %vm942
  %v944 = vsel %vm943, %v935, %v940
  %v945 = vrsqrt.pop %v932
  %v946 = vmul.f32 %v945, %v932
  %v947 = vmul.f32 %v946, %v945
  %v948 = vmul.f32 0.5, %v947
  %v949 = vsub.f32 1.5, %v948
  %v950 = vmul.f32 %v945, %v949
  %vm951 = vweird.f32 %v932
  %vm952 = vweird.f32 %v945
  %vm953 = vmor %vm951, %vm952
  %v954 = vsel %vm953, %v945, %v950
  %v955 = vrsqrt.pop %v933
  %v956 = vmul.f32 %v955, %v933
  %v957 = vmul.f32 %v956, %v955
  %v958 = vmul.f32 0.5, %v957
  %v959 = vsub.f32 1.5, %v958
  %v960 = vmul.f32 %v955, %v959
  %vm961 = vweird.f32 %v933
  %vm962 = vweird.f32 %v955
  %vm963 = vmor %vm961, %vm962
  %v964 = vsel %vm963, %v955, %v960
  %v965 = vrsqrt.pop %v934
  %v966 = vmul.f32 %v965, %v934
  %v967 = vmul.f32 %v966, %v965
  %v968 = vmul.f32 0.5, %v967
  %v969 = vsub.f32 1.5, %v968
  %v970 = vmul.f32 %v965, %v969
  %vm971 = vweird.f32 %v934
  %vm972 = vweird.f32 %v965
  %vm973 = vmor %vm971, %vm972
  %v974 = vsel %vm973, %v965, %v970
  %v975 = vmul.f32 %v907, %v944
  %v976 = vmul.f32 %v908, %v954
  %v977 = vmul.f32 %v909, %v964
  %v978 = vmul.f32 %v910, %v974
  %v979 = vld [vmem:[%s14] sm:$0xff]
  %v980 = vld [vmem:[%s14 + $0x8] sm:$0xff]
  %v981 = vld [vmem:[%s14 + $0x10] sm:$0xff]
  %v982 = vld [vmem:[%s14 + $0x18] sm:$0xff]
  %984 = vset.pattern.permute.xlu0 0
  %985 = vperm.xlu0 %984, %v979
  %v986 = vpop.permute.xlu0 %985
  %989 = vset.pattern.permute.xlu0 0
  %990 = vperm.xlu0 %989, %v980
  %v991 = vpop.permute.xlu0 %990
  %994 = vset.pattern.permute.xlu0 0
  %995 = vperm.xlu0 %994, %v981
  %v996 = vpop.permute.xlu0 %995
  %999 = vset.pattern.permute.xlu0 0
  %1000 = vperm.xlu0 %999, %v982
  %v1001 = vpop.permute.xlu0 %1000
  %v1003 = vmul.f32 %v975, %v986
  %v1004 = vmul.f32 %v976, %v991
  %v1005 = vmul.f32 %v977, %v996
  %v1006 = vmul.f32 %v978, %v1001
  %v1007 = vld [vmem:[%s15] sm:$0xff]
  %v1008 = vld [vmem:[%s15 + $0x8] sm:$0xff]
  %v1009 = vld [vmem:[%s15 + $0x10] sm:$0xff]
  %v1010 = vld [vmem:[%s15 + $0x18] sm:$0xff]
  %1012 = vset.pattern.permute.xlu0 0
  %1013 = vperm.xlu0 %1012, %v1007
  %v1014 = vpop.permute.xlu0 %1013
  %1017 = vset.pattern.permute.xlu0 0
  %1018 = vperm.xlu0 %1017, %v1008
  %v1019 = vpop.permute.xlu0 %1018
  %1022 = vset.pattern.permute.xlu0 0
  %1023 = vperm.xlu0 %1022, %v1009
  %v1024 = vpop.permute.xlu0 %1023
  %1027 = vset.pattern.permute.xlu0 0
  %1028 = vperm.xlu0 %1027, %v1010
  %v1029 = vpop.permute.xlu0 %1028
  %v1031 = vadd.f32 %v1003, %v1014
  %v1032 = vadd.f32 %v1004, %v1019
  %v1033 = vadd.f32 %v1005, %v1024
  %v1034 = vadd.f32 %v1006, %v1029
  %v1035 = vpack.c.bf16 %v1032, %v1031
  %v1036 = vpack.c.bf16 %v1034, %v1033
  %v1037 = vld [vmem:[%s16] sm:$0xf]
  %v1038 = vld [vmem:[%s16 + $0x4] sm:$0xf]
  %v1039 = vld [vmem:[%s16 + $0x8] sm:$0xf]
  %v1040 = vld [vmem:[%s16 + $0xc] sm:$0xf]
  %v1041 = vld [vmem:[%s16 + $0x10] sm:$0xf]
  %v1042 = vld [vmem:[%s16 + $0x14] sm:$0xf]
  %v1043 = vld [vmem:[%s17] sm:$0xff]
  %v1044 = vld [vmem:[%s17 + $0x8] sm:$0xff]
  %v1045 = vld [vmem:[%s17 + $0x10] sm:$0xff]
  %v1046 = vld [vmem:[%s17 + $0x18] sm:$0xff]
  %v1047 = vld [vmem:[%s17 + $0x20] sm:$0xff]
  %v1048 = vld [vmem:[%s17 + $0x28] sm:$0xff]
  %1050 = vset.pattern.permute.xlu0 0
  %1051 = vperm.xlu0 %1050, %v1043
  %v1052 = vpop.permute.xlu0 %1051
  %1055 = vset.pattern.permute.xlu0 0
  %1056 = vperm.xlu0 %1055, %v1044
  %v1057 = vpop.permute.xlu0 %1056
  %1060 = vset.pattern.permute.xlu0 0
  %1061 = vperm.xlu0 %1060, %v1045
  %v1062 = vpop.permute.xlu0 %1061
  %1065 = vset.pattern.permute.xlu0 0
  %1066 = vperm.xlu0 %1065, %v1046
  %v1067 = vpop.permute.xlu0 %1066
  %1070 = vset.pattern.permute.xlu0 0
  %1071 = vperm.xlu0 %1070, %v1047
  %v1072 = vpop.permute.xlu0 %1071
  %1075 = vset.pattern.permute.xlu0 0
  %1076 = vperm.xlu0 %1075, %v1048
  %v1077 = vpop.permute.xlu0 %1076
  %v1085 = vunpack.c.l.b16 %v1037
  %v1086 = vunpack.c.l.b16 %v1038
  %v1087 = vunpack.c.l.b16 %v1039
  %v1088 = vunpack.c.l.b16 %v1040
  %v1089 = vunpack.c.l.b16 %v1041
  %v1090 = vunpack.c.l.b16 %v1042
  %v1091 = vpack.c.b16 %v1086, %v1085
  %v1092 = vpack.c.b16 %v1088, %v1087
  %v1093 = vpack.c.b16 %v1090, %v1089
  %vm1094 = vcmask 261120
  %v1096 = vsel %vm1094, %v1091, 0
  %v1099 = vsel %vm1094, %v1092, 0
  %v1102 = vsel %vm1094, %v1093, 0
  %1104 = vmatpush.bf16.msra.mxu0 0
  %1105 = vmatpush.bf16.msra.mxu0 0
  %1106 = vmatpush.bf16.msra.mxu0 0
  %1107 = vmatpush.bf16.msra.mxu0 0
  %1108 = vmatpush.bf16.msra.mxu0 0
  %1109 = vmatpush.bf16.msra.mxu0 0
  %1110 = vmatpush.bf16.msra.mxu0 %v1036
  %1111 = vmatpush.bf16.msra.mxu0 %v1035
  %1112 = vmatmul.bf16.gmra.mxu0 %v1096
  %v1113 = vpop.f32.mrf.mxu0
  %v1114 = vadd.f32 %v1052, %v1113
  %v1115 = vpop.f32.mrf.mxu0
  %v1116 = vadd.f32 %v1057, %v1115
  %1117 = vmatmul.bf16.gmra.mxu0 %v1099
  %v1118 = vpop.f32.mrf.mxu0
  %v1119 = vadd.f32 %v1062, %v1118
  %v1120 = vpop.f32.mrf.mxu0
  %v1121 = vadd.f32 %v1067, %v1120
  %1122 = vmatmul.bf16.gmra.mxu0 %v1102
  %v1123 = vpop.f32.mrf.mxu0
  %v1124 = vadd.f32 %v1072, %v1123
  %v1125 = vpop.f32.mrf.mxu0
  %v1126 = vadd.f32 %v1077, %v1125
  %1127 = vdwg.mxu0
  %v1128 = vld [vmem:[%s18] sm:$0xff]
  %v1129 = vld [vmem:[%s18 + $0x8] sm:$0xff]
  %v1130 = vld [vmem:[%s18 + $0x10] sm:$0xff]
  %v1131 = vld [vmem:[%s18 + $0x18] sm:$0xff]
  %v1132 = vld [vmem:[%s18 + $0x20] sm:$0xff]
  %v1133 = vld [vmem:[%s18 + $0x28] sm:$0xff]
  %v1134 = vld [vmem:[%s19] sm:$0xff]
  %v1135 = vld [vmem:[%s19 + $0x8] sm:$0xff]
  %v1136 = vld [vmem:[%s20] sm:$0xff]
  %v1137 = vld [vmem:[%s20 + $0x8] sm:$0xff]
  %v1139 = vsel %vm174, %v1128, 0
  %v1142 = vsel %vm174, %v1129, 0
  %v1145 = vsel %vm174, %v1130, 0
  %v1148 = vsel %vm174, %v1131, 0
  %v1151 = vsel %vm174, %v1132, 0
  %v1154 = vsel %vm174, %v1133, 0
  %1156 = vmatpush.msra.mxu0 0.0
  %1157 = vmatpush.msra.mxu0 0.0
  %1158 = vmatpush.msra.mxu0 0.0
  %1159 = vmatpush.msra.mxu0 0.0
  %1160 = vmatpush.msra.mxu0 0.0
  %1161 = vmatpush.msra.mxu0 0.0
  %1162 = vmatpush.msra.mxu0 0.0
  %1163 = vmatpush.msra.mxu0 0.0
  %1164 = vmatpush.msra.mxu0 0.0
  %1165 = vmatpush.msra.mxu0 0.0
  %1166 = vmatpush.msra.mxu0 0.0
  %1167 = vmatpush.msra.mxu0 0.0
  %1168 = vmatpush.msra.mxu0 0.0
  %1169 = vmatpush.msra.mxu0 0.0
  %1170 = vmatpush.msra.mxu0 0.0
  %1171 = vmatpush.msra.mxu0 0.0
  %1172 = vmatmul.f32.gmra.mxu0 %v1139
  %v1173 = vpop.f32.mrf.mxu0
  %v1174 = vadd.f32 0.0, %v1173
  %1175 = vmatmul.f32.gmra.mxu0 %v1142
  %v1176 = vpop.f32.mrf.mxu0
  %v1177 = vadd.f32 0.0, %v1176
  %1178 = vmatmul.f32.gmra.mxu0 %v1145
  %v1179 = vpop.f32.mrf.mxu0
  %v1180 = vadd.f32 0.0, %v1179
  %1181 = vmatmul.f32.gmra.mxu0 %v1148
  %v1182 = vpop.f32.mrf.mxu0
  %v1183 = vadd.f32 0.0, %v1182
  %1184 = vmatmul.f32.gmra.mxu0 %v1151
  %v1185 = vpop.f32.mrf.mxu0
  %v1186 = vadd.f32 0.0, %v1185
  %1187 = vmatmul.f32.gmra.mxu0 %v1154
  %v1188 = vpop.f32.mrf.mxu0
  %v1189 = vadd.f32 0.0, %v1188
  %1190 = vdwg.mxu0
  %v1191 = vadd.f32 %v1114, %v1174
  %v1192 = vadd.f32 %v1116, %v1177
  %v1193 = vxor.u32 %v1191, 2147483648
  %v1194 = vxor.u32 %v1192, 2147483648
  %v1195 = vmul.f32 %v1193, 1.442695
  %v1196 = vpow.pop %v1195
  %v1197 = vmul.f32 %v1194, 1.442695
  %v1198 = vpow.pop %v1197
  %v1199 = vadd.f32 %v1196, 1.0
  %v1200 = vadd.f32 %v1198, 1.0
  %v1201 = vrcp.pop %v1199
  %v1202 = vmul.f32 %v1199, %v1201
  %v1203 = vsub.f32 1.0, %v1202
  %v1204 = vmul.f32 %v1201, %v1203
  %v1205 = vadd.f32 %v1201, %v1204
  %vm1206 = vweird.f32 %v1199
  %vm1207 = vweird.f32 %v1201
  %vm1208 = vmor %vm1206, %vm1207
  %v1209 = vsel %vm1208, %v1201, %v1205
  %v1210 = vand.u32 2147483647, %v1199
  %vm1211 = vcmp.eq.f32.partialorder %v1210, 8.507059e+37
  %v1212 = vand.u32 %v1199, 2147483648
  %v1213 = vor.u32 1.1754944e-38, %v1212
  %v1214 = vsel %vm1211, %v1213, %v1209
  %v1215 = vmul.f32 1.0, %v1214
  %v1216 = vrcp.pop %v1200
  %v1217 = vmul.f32 %v1200, %v1216
  %v1218 = vsub.f32 1.0, %v1217
  %v1219 = vmul.f32 %v1216, %v1218
  %v1220 = vadd.f32 %v1216, %v1219
  %vm1221 = vweird.f32 %v1200
  %vm1222 = vweird.f32 %v1216
  %vm1223 = vmor %vm1221, %vm1222
  %v1224 = vsel %vm1223, %v1216, %v1220
  %v1225 = vand.u32 2147483647, %v1200
  %vm1226 = vcmp.eq.f32.partialorder %v1225, 8.507059e+37
  %v1227 = vand.u32 %v1200, 2147483648
  %v1228 = vor.u32 1.1754944e-38, %v1227
  %v1229 = vsel %vm1226, %v1228, %v1224
  %v1230 = vmul.f32 1.0, %v1229
  %v1231 = vadd.f32 %v1119, %v1180
  %v1232 = vadd.f32 %v1121, %v1183
  %v1233 = vxor.u32 %v1231, 2147483648
  %v1234 = vxor.u32 %v1232, 2147483648
  %v1235 = vmul.f32 %v1233, 1.442695
  %v1236 = vpow.pop %v1235
  %v1237 = vmul.f32 %v1234, 1.442695
  %v1238 = vpow.pop %v1237
  %v1239 = vadd.f32 %v1236, 1.0
  %v1240 = vadd.f32 %v1238, 1.0
  %v1241 = vrcp.pop %v1239
  %v1242 = vmul.f32 %v1239, %v1241
  %v1243 = vsub.f32 1.0, %v1242
  %v1244 = vmul.f32 %v1241, %v1243
  %v1245 = vadd.f32 %v1241, %v1244
  %vm1246 = vweird.f32 %v1239
  %vm1247 = vweird.f32 %v1241
  %vm1248 = vmor %vm1246, %vm1247
  %v1249 = vsel %vm1248, %v1241, %v1245
  %v1250 = vand.u32 2147483647, %v1239
  %vm1251 = vcmp.eq.f32.partialorder %v1250, 8.507059e+37
  %v1252 = vand.u32 %v1239, 2147483648
  %v1253 = vor.u32 1.1754944e-38, %v1252
  %v1254 = vsel %vm1251, %v1253, %v1249
  %v1255 = vmul.f32 1.0, %v1254
  %v1256 = vrcp.pop %v1240
  %v1257 = vmul.f32 %v1240, %v1256
  %v1258 = vsub.f32 1.0, %v1257
  %v1259 = vmul.f32 %v1256, %v1258
  %v1260 = vadd.f32 %v1256, %v1259
  %vm1261 = vweird.f32 %v1240
  %vm1262 = vweird.f32 %v1256
  %vm1263 = vmor %vm1261, %vm1262
  %v1264 = vsel %vm1263, %v1256, %v1260
  %v1265 = vand.u32 2147483647, %v1240
  %vm1266 = vcmp.eq.f32.partialorder %v1265, 8.507059e+37
  %v1267 = vand.u32 %v1240, 2147483648
  %v1268 = vor.u32 1.1754944e-38, %v1267
  %v1269 = vsel %vm1266, %v1268, %v1264
  %v1270 = vmul.f32 1.0, %v1269
  %v1271 = vadd.f32 %v1186, %v1134
  %v1272 = vadd.f32 %v1189, %v1135
  %v1273 = vmul.f32 %v1215, %v1271
  %v1274 = vmul.f32 %v1230, %v1272
  %v1275 = vadd.f32 %v1124, %v1273
  %v1276 = vadd.f32 %v1126, %v1274
  %v1277 = vtanh.pop %v1275
  %v1278 = vtanh.pop %v1276
  %v1279 = vsub.f32 0.0, %v1277
  %v1280 = vsub.f32 0.0, %v1278
  %v1281 = vmul.f32 %v1255, %v1279
  %v1282 = vmul.f32 %v1270, %v1280
  %v1283 = vadd.f32 %v1277, %v1281
  %v1284 = vadd.f32 %v1278, %v1282
  %v1285 = vmul.f32 %v1136, %v1283
  %v1286 = vmul.f32 %v1137, %v1284
  %v1287 = vadd.f32 %v1285, 0.0
  %v1288 = vadd.f32 %v1286, 0.0
  %1289 = vmatpush.msra.mxu0 0.0
  %1290 = vmatpush.msra.mxu0 0.0
  %1291 = vmatpush.msra.mxu0 0.0
  %1292 = vmatpush.msra.mxu0 0.0
  %1293 = vmatpush.msra.mxu0 0.0
  %1294 = vmatpush.msra.mxu0 0.0
  %1295 = vmatpush.msra.mxu0 0.0
  %1296 = vmatpush.msra.mxu0 0.0
  %1297 = vmatpush.msra.mxu0 0.0
  %1298 = vmatpush.msra.mxu0 0.0
  %1299 = vmatpush.msra.mxu0 0.0
  %1300 = vmatpush.msra.mxu0 0.0
  %1301 = vmatpush.msra.mxu0 0.0
  %1302 = vmatpush.msra.mxu0 0.0
  %1303 = vmatpush.msra.mxu0 %v1288
  %1304 = vmatpush.msra.mxu0 %v1287
  %1305 = vmatmul.f32.gmra.mxu0 %v1139
  %v1306 = vpop.f32.mrf.mxu0
  %v1307 = vadd.f32 0.0, %v1306
  %1308 = vmatmul.f32.gmra.mxu0 %v1142
  %v1309 = vpop.f32.mrf.mxu0
  %v1310 = vadd.f32 0.0, %v1309
  %1311 = vmatmul.f32.gmra.mxu0 %v1145
  %v1312 = vpop.f32.mrf.mxu0
  %v1313 = vadd.f32 0.0, %v1312
  %1314 = vmatmul.f32.gmra.mxu0 %v1148
  %v1315 = vpop.f32.mrf.mxu0
  %v1316 = vadd.f32 0.0, %v1315
  %1317 = vmatmul.f32.gmra.mxu0 %v1151
  %v1318 = vpop.f32.mrf.mxu0
  %v1319 = vadd.f32 0.0, %v1318
  %1320 = vmatmul.f32.gmra.mxu0 %v1154
  %v1321 = vpop.f32.mrf.mxu0
  %v1322 = vadd.f32 0.0, %v1321
  %1323 = vdwg.mxu0
  %1326 = vrot.lane.b32.xlu0 %v1307, 1
  %v1327 = vpop.permute.xlu0 %1326
  %1328 = vrot.lane.b32.xlu0 %v1310, 1
  %v1329 = vpop.permute.xlu0 %1328
  %v1332 = vadd.f32 %v1114, %v1327
  %v1333 = vadd.f32 %v1116, %v1329
  %v1334 = vxor.u32 %v1332, 2147483648
  %v1335 = vxor.u32 %v1333, 2147483648
  %v1336 = vmul.f32 %v1334, 1.442695
  %v1337 = vpow.pop %v1336
  %v1338 = vmul.f32 %v1335, 1.442695
  %v1339 = vpow.pop %v1338
  %v1340 = vadd.f32 %v1337, 1.0
  %v1341 = vadd.f32 %v1339, 1.0
  %v1342 = vrcp.pop %v1340
  %v1343 = vmul.f32 %v1340, %v1342
  %v1344 = vsub.f32 1.0, %v1343
  %v1345 = vmul.f32 %v1342, %v1344
  %v1346 = vadd.f32 %v1342, %v1345
  %vm1347 = vweird.f32 %v1340
  %vm1348 = vweird.f32 %v1342
  %vm1349 = vmor %vm1347, %vm1348
  %v1350 = vsel %vm1349, %v1342, %v1346
  %v1351 = vand.u32 2147483647, %v1340
  %vm1352 = vcmp.eq.f32.partialorder %v1351, 8.507059e+37
  %v1353 = vand.u32 %v1340, 2147483648
  %v1354 = vor.u32 1.1754944e-38, %v1353
  %v1355 = vsel %vm1352, %v1354, %v1350
  %v1356 = vmul.f32 1.0, %v1355
  %v1357 = vrcp.pop %v1341
  %v1358 = vmul.f32 %v1341, %v1357
  %v1359 = vsub.f32 1.0, %v1358
  %v1360 = vmul.f32 %v1357, %v1359
  %v1361 = vadd.f32 %v1357, %v1360
  %vm1362 = vweird.f32 %v1341
  %vm1363 = vweird.f32 %v1357
  %vm1364 = vmor %vm1362, %vm1363
  %v1365 = vsel %vm1364, %v1357, %v1361
  %v1366 = vand.u32 2147483647, %v1341
  %vm1367 = vcmp.eq.f32.partialorder %v1366, 8.507059e+37
  %v1368 = vand.u32 %v1341, 2147483648
  %v1369 = vor.u32 1.1754944e-38, %v1368
  %v1370 = vsel %vm1367, %v1369, %v1365
  %v1371 = vmul.f32 1.0, %v1370
  %1374 = vrot.lane.b32.xlu0 %v1313, 1
  %v1375 = vpop.permute.xlu0 %1374
  %1376 = vrot.lane.b32.xlu0 %v1316, 1
  %v1377 = vpop.permute.xlu0 %1376
  %v1380 = vadd.f32 %v1119, %v1375
  %v1381 = vadd.f32 %v1121, %v1377
  %v1382 = vxor.u32 %v1380, 2147483648
  %v1383 = vxor.u32 %v1381, 2147483648
  %v1384 = vmul.f32 %v1382, 1.442695
  %v1385 = vpow.pop %v1384
  %v1386 = vmul.f32 %v1383, 1.442695
  %v1387 = vpow.pop %v1386
  %v1388 = vadd.f32 %v1385, 1.0
  %v1389 = vadd.f32 %v1387, 1.0
  %v1390 = vrcp.pop %v1388
  %v1391 = vmul.f32 %v1388, %v1390
  %v1392 = vsub.f32 1.0, %v1391
  %v1393 = vmul.f32 %v1390, %v1392
  %v1394 = vadd.f32 %v1390, %v1393
  %vm1395 = vweird.f32 %v1388
  %vm1396 = vweird.f32 %v1390
  %vm1397 = vmor %vm1395, %vm1396
  %v1398 = vsel %vm1397, %v1390, %v1394
  %v1399 = vand.u32 2147483647, %v1388
  %vm1400 = vcmp.eq.f32.partialorder %v1399, 8.507059e+37
  %v1401 = vand.u32 %v1388, 2147483648
  %v1402 = vor.u32 1.1754944e-38, %v1401
  %v1403 = vsel %vm1400, %v1402, %v1398
  %v1404 = vmul.f32 1.0, %v1403
  %v1405 = vrcp.pop %v1389
  %v1406 = vmul.f32 %v1389, %v1405
  %v1407 = vsub.f32 1.0, %v1406
  %v1408 = vmul.f32 %v1405, %v1407
  %v1409 = vadd.f32 %v1405, %v1408
  %vm1410 = vweird.f32 %v1389
  %vm1411 = vweird.f32 %v1405
  %vm1412 = vmor %vm1410, %vm1411
  %v1413 = vsel %vm1412, %v1405, %v1409
  %v1414 = vand.u32 2147483647, %v1389
  %vm1415 = vcmp.eq.f32.partialorder %v1414, 8.507059e+37
  %v1416 = vand.u32 %v1389, 2147483648
  %v1417 = vor.u32 1.1754944e-38, %v1416
  %v1418 = vsel %vm1415, %v1417, %v1413
  %v1419 = vmul.f32 1.0, %v1418
  %v1420 = vadd.f32 %v1319, %v1134
  %v1421 = vadd.f32 %v1322, %v1135
  %1424 = vrot.lane.b32.xlu0 %v1420, 1
  %v1425 = vpop.permute.xlu0 %1424
  %1426 = vrot.lane.b32.xlu0 %v1421, 1
  %v1427 = vpop.permute.xlu0 %1426
  %v1430 = vmul.f32 %v1356, %v1425
  %v1431 = vmul.f32 %v1371, %v1427
  %v1432 = vadd.f32 %v1124, %v1430
  %v1433 = vadd.f32 %v1126, %v1431
  %v1434 = vtanh.pop %v1432
  %v1435 = vtanh.pop %v1433
  %1438 = vrot.lane.b32.xlu0 %v1434, 127
  %v1439 = vpop.permute.xlu0 %1438
  %1440 = vrot.lane.b32.xlu0 %v1435, 127
  %v1441 = vpop.permute.xlu0 %1440
  %v1444 = vsub.f32 %v1287, %v1439
  %v1445 = vsub.f32 %v1288, %v1441
  %1448 = vrot.lane.b32.xlu0 %v1444, 1
  %v1449 = vpop.permute.xlu0 %1448
  %1450 = vrot.lane.b32.xlu0 %v1445, 1
  %v1451 = vpop.permute.xlu0 %1450
  %v1454 = vmul.f32 %v1404, %v1449
  %v1455 = vmul.f32 %v1419, %v1451
  %v1456 = vadd.f32 %v1434, %v1454
  %v1457 = vadd.f32 %v1435, %v1455
  %1460 = vrot.lane.b32.xlu0 %v1287, 1
  %v1461 = vpop.permute.xlu0 %1460
  %1462 = vrot.lane.b32.xlu0 %v1288, 1
  %v1463 = vpop.permute.xlu0 %1462
  %v1466 = vsub.f32 %v1456, %v1461
  %v1467 = vsub.f32 %v1457, %v1463
  %v1468 = vmul.f32 %v1136, %v1466
  %v1469 = vmul.f32 %v1137, %v1467
  %1472 = vrot.lane.b32.xlu0 %v1468, 127
  %v1473 = vpop.permute.xlu0 %1472
  %1474 = vrot.lane.b32.xlu0 %v1469, 127
  %v1475 = vpop.permute.xlu0 %1474
  %v1478 = vadd.f32 %v1287, %v1473
  %v1479 = vadd.f32 %v1288, %v1475
  %1480 = vmatpush.msra.mxu0 0.0
  %1481 = vmatpush.msra.mxu0 0.0
  %1482 = vmatpush.msra.mxu0 0.0
  %1483 = vmatpush.msra.mxu0 0.0
  %1484 = vmatpush.msra.mxu0 0.0
  %1485 = vmatpush.msra.mxu0 0.0
  %1486 = vmatpush.msra.mxu0 0.0
  %1487 = vmatpush.msra.mxu0 0.0
  %1488 = vmatpush.msra.mxu0 0.0
  %1489 = vmatpush.msra.mxu0 0.0
  %1490 = vmatpush.msra.mxu0 0.0
  %1491 = vmatpush.msra.mxu0 0.0
  %1492 = vmatpush.msra.mxu0 0.0
  %1493 = vmatpush.msra.mxu0 0.0
  %1494 = vmatpush.msra.mxu0 %v1479
  %1495 = vmatpush.msra.mxu0 %v1478
  %1496 = vmatmul.f32.gmra.mxu0 %v1139
  %v1497 = vpop.f32.mrf.mxu0
  %v1498 = vadd.f32 0.0, %v1497
  %1499 = vmatmul.f32.gmra.mxu0 %v1142
  %v1500 = vpop.f32.mrf.mxu0
  %v1501 = vadd.f32 0.0, %v1500
  %1502 = vmatmul.f32.gmra.mxu0 %v1145
  %v1503 = vpop.f32.mrf.mxu0
  %v1504 = vadd.f32 0.0, %v1503
  %1505 = vmatmul.f32.gmra.mxu0 %v1148
  %v1506 = vpop.f32.mrf.mxu0
  %v1507 = vadd.f32 0.0, %v1506
  %1508 = vmatmul.f32.gmra.mxu0 %v1151
  %v1509 = vpop.f32.mrf.mxu0
  %v1510 = vadd.f32 0.0, %v1509
  %1511 = vmatmul.f32.gmra.mxu0 %v1154
  %v1512 = vpop.f32.mrf.mxu0
  %v1513 = vadd.f32 0.0, %v1512
  %1514 = vdwg.mxu0
  %1517 = vrot.lane.b32.xlu0 %v1498, 2
  %v1518 = vpop.permute.xlu0 %1517
  %1519 = vrot.lane.b32.xlu0 %v1501, 2
  %v1520 = vpop.permute.xlu0 %1519
  %v1523 = vadd.f32 %v1114, %v1518
  %v1524 = vadd.f32 %v1116, %v1520
  %v1525 = vxor.u32 %v1523, 2147483648
  %v1526 = vxor.u32 %v1524, 2147483648
  %v1527 = vmul.f32 %v1525, 1.442695
  %v1528 = vpow.pop %v1527
  %v1529 = vmul.f32 %v1526, 1.442695
  %v1530 = vpow.pop %v1529
  %v1531 = vadd.f32 %v1528, 1.0
  %v1532 = vadd.f32 %v1530, 1.0
  %v1533 = vrcp.pop %v1531
  %v1534 = vmul.f32 %v1531, %v1533
  %v1535 = vsub.f32 1.0, %v1534
  %v1536 = vmul.f32 %v1533, %v1535
  %v1537 = vadd.f32 %v1533, %v1536
  %vm1538 = vweird.f32 %v1531
  %vm1539 = vweird.f32 %v1533
  %vm1540 = vmor %vm1538, %vm1539
  %v1541 = vsel %vm1540, %v1533, %v1537
  %v1542 = vand.u32 2147483647, %v1531
  %vm1543 = vcmp.eq.f32.partialorder %v1542, 8.507059e+37
  %v1544 = vand.u32 %v1531, 2147483648
  %v1545 = vor.u32 1.1754944e-38, %v1544
  %v1546 = vsel %vm1543, %v1545, %v1541
  %v1547 = vmul.f32 1.0, %v1546
  %v1548 = vrcp.pop %v1532
  %v1549 = vmul.f32 %v1532, %v1548
  %v1550 = vsub.f32 1.0, %v1549
  %v1551 = vmul.f32 %v1548, %v1550
  %v1552 = vadd.f32 %v1548, %v1551
  %vm1553 = vweird.f32 %v1532
  %vm1554 = vweird.f32 %v1548
  %vm1555 = vmor %vm1553, %vm1554
  %v1556 = vsel %vm1555, %v1548, %v1552
  %v1557 = vand.u32 2147483647, %v1532
  %vm1558 = vcmp.eq.f32.partialorder %v1557, 8.507059e+37
  %v1559 = vand.u32 %v1532, 2147483648
  %v1560 = vor.u32 1.1754944e-38, %v1559
  %v1561 = vsel %vm1558, %v1560, %v1556
  %v1562 = vmul.f32 1.0, %v1561
  %1565 = vrot.lane.b32.xlu0 %v1504, 2
  %v1566 = vpop.permute.xlu0 %1565
  %1567 = vrot.lane.b32.xlu0 %v1507, 2
  %v1568 = vpop.permute.xlu0 %1567
  %v1571 = vadd.f32 %v1119, %v1566
  %v1572 = vadd.f32 %v1121, %v1568
  %v1573 = vxor.u32 %v1571, 2147483648
  %v1574 = vxor.u32 %v1572, 2147483648
  %v1575 = vmul.f32 %v1573, 1.442695
  %v1576 = vpow.pop %v1575
  %v1577 = vmul.f32 %v1574, 1.442695
  %v1578 = vpow.pop %v1577
  %v1579 = vadd.f32 %v1576, 1.0
  %v1580 = vadd.f32 %v1578, 1.0
  %v1581 = vrcp.pop %v1579
  %v1582 = vmul.f32 %v1579, %v1581
  %v1583 = vsub.f32 1.0, %v1582
  %v1584 = vmul.f32 %v1581, %v1583
  %v1585 = vadd.f32 %v1581, %v1584
  %vm1586 = vweird.f32 %v1579
  %vm1587 = vweird.f32 %v1581
  %vm1588 = vmor %vm1586, %vm1587
  %v1589 = vsel %vm1588, %v1581, %v1585
  %v1590 = vand.u32 2147483647, %v1579
  %vm1591 = vcmp.eq.f32.partialorder %v1590, 8.507059e+37
  %v1592 = vand.u32 %v1579, 2147483648
  %v1593 = vor.u32 1.1754944e-38, %v1592
  %v1594 = vsel %vm1591, %v1593, %v1589
  %v1595 = vmul.f32 1.0, %v1594
  %v1596 = vrcp.pop %v1580
  %v1597 = vmul.f32 %v1580, %v1596
  %v1598 = vsub.f32 1.0, %v1597
  %v1599 = vmul.f32 %v1596, %v1598
  %v1600 = vadd.f32 %v1596, %v1599
  %vm1601 = vweird.f32 %v1580
  %vm1602 = vweird.f32 %v1596
  %vm1603 = vmor %vm1601, %vm1602
  %v1604 = vsel %vm1603, %v1596, %v1600
  %v1605 = vand.u32 2147483647, %v1580
  %vm1606 = vcmp.eq.f32.partialorder %v1605, 8.507059e+37
  %v1607 = vand.u32 %v1580, 2147483648
  %v1608 = vor.u32 1.1754944e-38, %v1607
  %v1609 = vsel %vm1606, %v1608, %v1604
  %v1610 = vmul.f32 1.0, %v1609
  %v1611 = vadd.f32 %v1510, %v1134
  %v1612 = vadd.f32 %v1513, %v1135
  %1615 = vrot.lane.b32.xlu0 %v1611, 2
  %v1616 = vpop.permute.xlu0 %1615
  %1617 = vrot.lane.b32.xlu0 %v1612, 2
  %v1618 = vpop.permute.xlu0 %1617
  %v1621 = vmul.f32 %v1547, %v1616
  %v1622 = vmul.f32 %v1562, %v1618
  %v1623 = vadd.f32 %v1124, %v1621
  %v1624 = vadd.f32 %v1126, %v1622
  %v1625 = vtanh.pop %v1623
  %v1626 = vtanh.pop %v1624
  %1629 = vrot.lane.b32.xlu0 %v1625, 126
  %v1630 = vpop.permute.xlu0 %1629
  %1631 = vrot.lane.b32.xlu0 %v1626, 126
  %v1632 = vpop.permute.xlu0 %1631
  %v1635 = vsub.f32 %v1478, %v1630
  %v1636 = vsub.f32 %v1479, %v1632
  %1639 = vrot.lane.b32.xlu0 %v1635, 2
  %v1640 = vpop.permute.xlu0 %1639
  %1641 = vrot.lane.b32.xlu0 %v1636, 2
  %v1642 = vpop.permute.xlu0 %1641
  %v1645 = vmul.f32 %v1595, %v1640
  %v1646 = vmul.f32 %v1610, %v1642
  %v1647 = vadd.f32 %v1625, %v1645
  %v1648 = vadd.f32 %v1626, %v1646
  %1651 = vrot.lane.b32.xlu0 %v1478, 2
  %v1652 = vpop.permute.xlu0 %1651
  %1653 = vrot.lane.b32.xlu0 %v1479, 2
  %v1654 = vpop.permute.xlu0 %1653
  %v1657 = vsub.f32 %v1647, %v1652
  %v1658 = vsub.f32 %v1648, %v1654
  %v1659 = vmul.f32 %v1136, %v1657
  %v1660 = vmul.f32 %v1137, %v1658
  %1663 = vrot.lane.b32.xlu0 %v1659, 126
  %v1664 = vpop.permute.xlu0 %1663
  %1665 = vrot.lane.b32.xlu0 %v1660, 126
  %v1666 = vpop.permute.xlu0 %1665
  %v1669 = vadd.f32 %v1478, %v1664
  %v1670 = vadd.f32 %v1479, %v1666
  %1671 = vmatpush.msra.mxu0 0.0
  %1672 = vmatpush.msra.mxu0 0.0
  %1673 = vmatpush.msra.mxu0 0.0
  %1674 = vmatpush.msra.mxu0 0.0
  %1675 = vmatpush.msra.mxu0 0.0
  %1676 = vmatpush.msra.mxu0 0.0
  %1677 = vmatpush.msra.mxu0 0.0
  %1678 = vmatpush.msra.mxu0 0.0
  %1679 = vmatpush.msra.mxu0 0.0
  %1680 = vmatpush.msra.mxu0 0.0
  %1681 = vmatpush.msra.mxu0 0.0
  %1682 = vmatpush.msra.mxu0 0.0
  %1683 = vmatpush.msra.mxu0 0.0
  %1684 = vmatpush.msra.mxu0 0.0
  %1685 = vmatpush.msra.mxu0 %v1670
  %1686 = vmatpush.msra.mxu0 %v1669
  %1687 = vmatmul.f32.gmra.mxu0 %v1139
  %v1688 = vpop.f32.mrf.mxu0
  %v1689 = vadd.f32 0.0, %v1688
  %1690 = vmatmul.f32.gmra.mxu0 %v1142
  %v1691 = vpop.f32.mrf.mxu0
  %v1692 = vadd.f32 0.0, %v1691
  %1693 = vmatmul.f32.gmra.mxu0 %v1145
  %v1694 = vpop.f32.mrf.mxu0
  %v1695 = vadd.f32 0.0, %v1694
  %1696 = vmatmul.f32.gmra.mxu0 %v1148
  %v1697 = vpop.f32.mrf.mxu0
  %v1698 = vadd.f32 0.0, %v1697
  %1699 = vmatmul.f32.gmra.mxu0 %v1151
  %v1700 = vpop.f32.mrf.mxu0
  %v1701 = vadd.f32 0.0, %v1700
  %1702 = vmatmul.f32.gmra.mxu0 %v1154
  %v1703 = vpop.f32.mrf.mxu0
  %v1704 = vadd.f32 0.0, %v1703
  %1705 = vdwg.mxu0
  %1708 = vrot.lane.b32.xlu0 %v1689, 3
  %v1709 = vpop.permute.xlu0 %1708
  %1710 = vrot.lane.b32.xlu0 %v1692, 3
  %v1711 = vpop.permute.xlu0 %1710
  %v1714 = vadd.f32 %v1114, %v1709
  %v1715 = vadd.f32 %v1116, %v1711
  %v1716 = vxor.u32 %v1714, 2147483648
  %v1717 = vxor.u32 %v1715, 2147483648
  %v1718 = vmul.f32 %v1716, 1.442695
  %v1719 = vpow.pop %v1718
  %v1720 = vmul.f32 %v1717, 1.442695
  %v1721 = vpow.pop %v1720
  %v1722 = vadd.f32 %v1719, 1.0
  %v1723 = vadd.f32 %v1721, 1.0
  %v1724 = vrcp.pop %v1722
  %v1725 = vmul.f32 %v1722, %v1724
  %v1726 = vsub.f32 1.0, %v1725
  %v1727 = vmul.f32 %v1724, %v1726
  %v1728 = vadd.f32 %v1724, %v1727
  %vm1729 = vweird.f32 %v1722
  %vm1730 = vweird.f32 %v1724
  %vm1731 = vmor %vm1729, %vm1730
  %v1732 = vsel %vm1731, %v1724, %v1728
  %v1733 = vand.u32 2147483647, %v1722
  %vm1734 = vcmp.eq.f32.partialorder %v1733, 8.507059e+37
  %v1735 = vand.u32 %v1722, 2147483648
  %v1736 = vor.u32 1.1754944e-38, %v1735
  %v1737 = vsel %vm1734, %v1736, %v1732
  %v1738 = vmul.f32 1.0, %v1737
  %v1739 = vrcp.pop %v1723
  %v1740 = vmul.f32 %v1723, %v1739
  %v1741 = vsub.f32 1.0, %v1740
  %v1742 = vmul.f32 %v1739, %v1741
  %v1743 = vadd.f32 %v1739, %v1742
  %vm1744 = vweird.f32 %v1723
  %vm1745 = vweird.f32 %v1739
  %vm1746 = vmor %vm1744, %vm1745
  %v1747 = vsel %vm1746, %v1739, %v1743
  %v1748 = vand.u32 2147483647, %v1723
  %vm1749 = vcmp.eq.f32.partialorder %v1748, 8.507059e+37
  %v1750 = vand.u32 %v1723, 2147483648
  %v1751 = vor.u32 1.1754944e-38, %v1750
  %v1752 = vsel %vm1749, %v1751, %v1747
  %v1753 = vmul.f32 1.0, %v1752
  %1756 = vrot.lane.b32.xlu0 %v1695, 3
  %v1757 = vpop.permute.xlu0 %1756
  %1758 = vrot.lane.b32.xlu0 %v1698, 3
  %v1759 = vpop.permute.xlu0 %1758
  %v1762 = vadd.f32 %v1119, %v1757
  %v1763 = vadd.f32 %v1121, %v1759
  %v1764 = vxor.u32 %v1762, 2147483648
  %v1765 = vxor.u32 %v1763, 2147483648
  %v1766 = vmul.f32 %v1764, 1.442695
  %v1767 = vpow.pop %v1766
  %v1768 = vmul.f32 %v1765, 1.442695
  %v1769 = vpow.pop %v1768
  %v1770 = vadd.f32 %v1767, 1.0
  %v1771 = vadd.f32 %v1769, 1.0
  %v1772 = vrcp.pop %v1770
  %v1773 = vmul.f32 %v1770, %v1772
  %v1774 = vsub.f32 1.0, %v1773
  %v1775 = vmul.f32 %v1772, %v1774
  %v1776 = vadd.f32 %v1772, %v1775
  %vm1777 = vweird.f32 %v1770
  %vm1778 = vweird.f32 %v1772
  %vm1779 = vmor %vm1777, %vm1778
  %v1780 = vsel %vm1779, %v1772, %v1776
  %v1781 = vand.u32 2147483647, %v1770
  %vm1782 = vcmp.eq.f32.partialorder %v1781, 8.507059e+37
  %v1783 = vand.u32 %v1770, 2147483648
  %v1784 = vor.u32 1.1754944e-38, %v1783
  %v1785 = vsel %vm1782, %v1784, %v1780
  %v1786 = vmul.f32 1.0, %v1785
  %v1787 = vrcp.pop %v1771
  %v1788 = vmul.f32 %v1771, %v1787
  %v1789 = vsub.f32 1.0, %v1788
  %v1790 = vmul.f32 %v1787, %v1789
  %v1791 = vadd.f32 %v1787, %v1790
  %vm1792 = vweird.f32 %v1771
  %vm1793 = vweird.f32 %v1787
  %vm1794 = vmor %vm1792, %vm1793
  %v1795 = vsel %vm1794, %v1787, %v1791
  %v1796 = vand.u32 2147483647, %v1771
  %vm1797 = vcmp.eq.f32.partialorder %v1796, 8.507059e+37
  %v1798 = vand.u32 %v1771, 2147483648
  %v1799 = vor.u32 1.1754944e-38, %v1798
  %v1800 = vsel %vm1797, %v1799, %v1795
  %v1801 = vmul.f32 1.0, %v1800
  %v1802 = vadd.f32 %v1701, %v1134
  %v1803 = vadd.f32 %v1704, %v1135
  %1806 = vrot.lane.b32.xlu0 %v1802, 3
  %v1807 = vpop.permute.xlu0 %1806
  %1808 = vrot.lane.b32.xlu0 %v1803, 3
  %v1809 = vpop.permute.xlu0 %1808
  %v1812 = vmul.f32 %v1738, %v1807
  %v1813 = vmul.f32 %v1753, %v1809
  %v1814 = vadd.f32 %v1124, %v1812
  %v1815 = vadd.f32 %v1126, %v1813
  %v1816 = vtanh.pop %v1814
  %v1817 = vtanh.pop %v1815
  %1820 = vrot.lane.b32.xlu0 %v1816, 125
  %v1821 = vpop.permute.xlu0 %1820
  %1822 = vrot.lane.b32.xlu0 %v1817, 125
  %v1823 = vpop.permute.xlu0 %1822
  %v1826 = vsub.f32 %v1669, %v1821
  %v1827 = vsub.f32 %v1670, %v1823
  %1830 = vrot.lane.b32.xlu0 %v1826, 3
  %v1831 = vpop.permute.xlu0 %1830
  %1832 = vrot.lane.b32.xlu0 %v1827, 3
  %v1833 = vpop.permute.xlu0 %1832
  %v1836 = vmul.f32 %v1786, %v1831
  %v1837 = vmul.f32 %v1801, %v1833
  %v1838 = vadd.f32 %v1816, %v1836
  %v1839 = vadd.f32 %v1817, %v1837
  %1842 = vrot.lane.b32.xlu0 %v1669, 3
  %v1843 = vpop.permute.xlu0 %1842
  %1844 = vrot.lane.b32.xlu0 %v1670, 3
  %v1845 = vpop.permute.xlu0 %1844
  %v1848 = vsub.f32 %v1838, %v1843
  %v1849 = vsub.f32 %v1839, %v1845
  %v1850 = vmul.f32 %v1136, %v1848
  %v1851 = vmul.f32 %v1137, %v1849
  %1854 = vrot.lane.b32.xlu0 %v1850, 125
  %v1855 = vpop.permute.xlu0 %1854
  %1856 = vrot.lane.b32.xlu0 %v1851, 125
  %v1857 = vpop.permute.xlu0 %1856
  %v1860 = vadd.f32 %v1669, %v1855
  %v1861 = vadd.f32 %v1670, %v1857
  %v1862 = vld [vmem:[%s21] sm:$0xf]
  %v1864 = vsel %vm527, %v1862, 0
  %1866 = vmatpush.msra.mxu0 0.0
  %1867 = vmatpush.msra.mxu0 0.0
  %1868 = vmatpush.msra.mxu0 0.0
  %1869 = vmatpush.msra.mxu0 0.0
  %1870 = vmatpush.msra.mxu0 0.0
  %1871 = vmatpush.msra.mxu0 0.0
  %1872 = vmatpush.msra.mxu0 0.0
  %1873 = vmatpush.msra.mxu0 0.0
  %1874 = vmatpush.msra.mxu0 0.0
  %1875 = vmatpush.msra.mxu0 0.0
  %1876 = vmatpush.msra.mxu0 0.0
  %1877 = vmatpush.msra.mxu0 0.0
  %1878 = vmatpush.msra.mxu0 0.0
  %1879 = vmatpush.msra.mxu0 0.0
  %1880 = vmatpush.msra.mxu0 0.0
  %1881 = vmatpush.msra.mxu0 %v1860
  %1882 = vmatmul.f32.gmra.mxu0 %v1864
  %v1883 = vpop.f32.mrf.mxu0
  %v1884 = vadd.f32 0.0, %v1883
  %1885 = vdwg.mxu0
  %1886 = vmatpush.msra.mxu0 0.0
  %1887 = vmatpush.msra.mxu0 0.0
  %1888 = vmatpush.msra.mxu0 0.0
  %1889 = vmatpush.msra.mxu0 0.0
  %1890 = vmatpush.msra.mxu0 0.0
  %1891 = vmatpush.msra.mxu0 0.0
  %1892 = vmatpush.msra.mxu0 0.0
  %1893 = vmatpush.msra.mxu0 0.0
  %1894 = vmatpush.msra.mxu0 0.0
  %1895 = vmatpush.msra.mxu0 0.0
  %1896 = vmatpush.msra.mxu0 0.0
  %1897 = vmatpush.msra.mxu0 0.0
  %1898 = vmatpush.msra.mxu0 0.0
  %1899 = vmatpush.msra.mxu0 0.0
  %1900 = vmatpush.msra.mxu0 0.0
  %1901 = vmatpush.msra.mxu0 %v1861
  %1902 = vmatmul.f32.gmra.mxu0 %v1864
  %v1903 = vpop.f32.mrf.mxu0
  %v1904 = vadd.f32 0.0, %v1903
  %1905 = vdwg.mxu0
  %1907 = vrot.lane.b32.xlu0 %v1904, 1
  %v1908 = vpop.permute.xlu0 %1907
  %vm1910 = vcmask 7168
  %v1911 = vsel %vm1910, %v1884, %v1908
  %v1912 = vld [vmem:[%s22] sm:$0xf]
  %1914 = vset.pattern.permute.xlu0 0
  %1915 = vperm.xlu0 %1914, %v1912
  %v1916 = vpop.permute.xlu0 %1915
  %v1918 = vadd.f32 %v1911, %v1916
  %vm1919 = vcmask 11264
  %v1920 = vsel %vm1919, %v1918, -inf
  %1921 = vmax.xlane.f32.xlu0 %v1920
  %v1922 = vpop.xlane.xlu0 %1921
  %v1923 = vsub.f32 %v1918, %v1922
  %v1924 = vmul.f32 %v1923, 1.442695
  %v1925 = vpow.pop %v1924
  %v1926 = vsel %vm1919, %v1925, 0.0
  %1927 = vadd.xlane.f32.xlu0 %v1926
  %v1928 = vpop.xlane.xlu0 %1927
  %v1929 = vrcp.pop %v1928
  %v1930 = vmul.f32 %v1928, %v1929
  %v1931 = vsub.f32 1.0, %v1930
  %v1932 = vmul.f32 %v1929, %v1931
  %v1933 = vadd.f32 %v1929, %v1932
  %vm1934 = vweird.f32 %v1928
  %vm1935 = vweird.f32 %v1929
  %vm1936 = vmor %vm1934, %vm1935
  %v1937 = vsel %vm1936, %v1929, %v1933
  %v1938 = vand.u32 2147483647, %v1928
  %vm1939 = vcmp.eq.f32.partialorder %v1938, 8.507059e+37
  %v1940 = vand.u32 %v1928, 2147483648
  %v1941 = vor.u32 1.1754944e-38, %v1940
  %v1942 = vsel %vm1939, %v1941, %v1937
  %v1943 = vmul.f32 %v1925, %v1942
  %v1944 = vld [vmem:[%s23] sm:$0xff]
  %v1945 = vld [vmem:[%s24] sm:$0xff]
  %1947 = vset.pattern.permute.xlu0 0
  %1948 = vperm.xlu0 %1947, %v1945
  %v1949 = vpop.permute.xlu0 %1948
  %v1952 = vsel %vm883, %v1944, 0
  %v1955 = vsel %vm738, %v1943, 0
  %1957 = vmatpush.msra.mxu0 0.0
  %1958 = vmatpush.msra.mxu0 0.0
  %1959 = vmatpush.msra.mxu0 0.0
  %1960 = vmatpush.msra.mxu0 0.0
  %1961 = vmatpush.msra.mxu0 0.0
  %1962 = vmatpush.msra.mxu0 0.0
  %1963 = vmatpush.msra.mxu0 0.0
  %1964 = vmatpush.msra.mxu0 0.0
  %1965 = vmatpush.msra.mxu0 0.0
  %1966 = vmatpush.msra.mxu0 0.0
  %1967 = vmatpush.msra.mxu0 0.0
  %1968 = vmatpush.msra.mxu0 0.0
  %1969 = vmatpush.msra.mxu0 0.0
  %1970 = vmatpush.msra.mxu0 0.0
  %1971 = vmatpush.msra.mxu0 0.0
  %1972 = vmatpush.msra.mxu0 %v1955
  %1973 = vmatmul.f32.gmra.mxu0 %v1952
  %v1974 = vpop.f32.mrf.mxu0
  %v1975 = vadd.f32 %v1949, %v1974
  %1976 = vdwg.mxu0
  %vm1977 = vcmask 15360
  %1978 = vst.msk [vmem:[%s25] sm:$0xff] %vm1977, %v1975
  // Predicated region
  $region102: #{utterance_level_prosody_encoder.1} parent=0 // pred_check
    _
  $region103: #{utterance_level_prosody_encoder.1} parent=0 // pred_check_branch
    %1980 = sbr.rel (0) target = $region105
  $region104: #{utterance_level_prosody_encoder.1} parent=0 // pred_region
    _
  $region105: #{utterance_level_prosody_encoder.1} parent=0 // pred_fallthru
    _
  // Predicated region
  $region106: #{utterance_level_prosody_encoder.1} parent=0 // pred_check
    _
  $region107: #{utterance_level_prosody_encoder.1} parent=0 // pred_check_branch
    %1982 = sbr.rel (0) target = $region109
  $region108: #{utterance_level_prosody_encoder.1} parent=0 // pred_region
    _
  $region109: #{utterance_level_prosody_encoder.1} parent=0 // pred_fallthru
    _

</llo_original>
